<compile_context>
chip_gen: v5e
topology: v5e:2x2
jax: 0.10.0
libtpu: 0.0.40
codegen_flags: <defaults>
</compile_context>

<pallas_src>
import jax
import jax.numpy as jnp
from jax import lax
from jax.experimental import pallas as pl
from jax.experimental.pallas import tpu as pltpu

BN_EPS = 1e-5
D_IN = 256
D_HID = 4096
TN = 512                      # hidden-dim tile streamed per grid step
N_SPLIT = 2                   # leading "parallel" axis (2 TCs on v7x)
K_STEPS = D_HID // (N_SPLIT * TN)


def pred_mlp_kernel(x_ref, w1_ref, b1_ref, gamma_ref, beta_ref, w2_ref,
                    partial_ref, acc_ref):
    k = pl.program_id(1)

    @pl.when(k == 0)
    def _():
        acc_ref[...] = jnp.zeros_like(acc_ref)

    # fc1 partial: [B, 256] @ [256, TN]  (bf16 inputs, f32 accumulation)
    h = jnp.dot(x_ref[...], w1_ref[...],
                preferred_element_type=jnp.float32) + b1_ref[...]

    # BatchNorm1d (training-mode batch statistics), single fused pass.
    # Per-feature mean / biased variance over the batch axis -> feature tiling
    # is bit-exact w.r.t. the untiled computation.
    mean = jnp.mean(h, axis=0, keepdims=True)                # [1, TN]
    mean_sq = jnp.mean(h * h, axis=0, keepdims=True)         # [1, TN]
    var = mean_sq - mean * mean
    h = (h - mean) * lax.rsqrt(var + BN_EPS)
    h = h * gamma_ref[...] + beta_ref[...]

    # ReLU
    h = jnp.maximum(h, 0.0)

    # fc2 partial accumulate: [B, TN] @ [TN, 256] -> f32 accumulator
    acc_ref[...] += jnp.dot(h.astype(w2_ref.dtype), w2_ref[...],
                            preferred_element_type=jnp.float32)

    @pl.when(k == pl.num_programs(1) - 1)
    def _():
        partial_ref[...] = acc_ref[...]


@jax.jit
def pred_mlp(x, w1, b1, gamma, beta, w2, b2):
    """x: [B, 256] f32.  Weights pre-transposed: w1 [256,4096], w2 [4096,256]."""
    B = x.shape[0]
    x_bf = x.astype(jnp.bfloat16)
    w1_bf = w1.astype(jnp.bfloat16)
    w2_bf = w2.astype(jnp.bfloat16)

    nk = K_STEPS   # k-steps per core-split

    partials = pl.pallas_call(
        pred_mlp_kernel,
        out_shape=jax.ShapeDtypeStruct((N_SPLIT, B, D_IN), jnp.float32),
        grid_spec=pltpu.PrefetchScalarGridSpec(
            num_scalar_prefetch=0,
            grid=(N_SPLIT, nk),
            in_specs=[
                pl.BlockSpec((B, D_IN), lambda c, k: (0, 0)),            # x (resident)
                pl.BlockSpec((D_IN, TN), lambda c, k: (0, c * nk + k)),  # w1 tile
                pl.BlockSpec((1, TN), lambda c, k: (0, c * nk + k)),     # b1 tile
                pl.BlockSpec((1, TN), lambda c, k: (0, c * nk + k)),     # gamma tile
                pl.BlockSpec((1, TN), lambda c, k: (0, c * nk + k)),     # beta tile
                pl.BlockSpec((TN, D_IN), lambda c, k: (c * nk + k, 0)),  # w2 tile
            ],
            out_specs=pl.BlockSpec((None, B, D_IN), lambda c, k: (c, 0, 0)),
            scratch_shapes=[pltpu.VMEM((B, D_IN), jnp.float32)],
        ),
        compiler_params=pltpu.CompilerParams(
            dimension_semantics=("parallel", "arbitrary")),
        cost_estimate=pl.CostEstimate(
            flops=4 * B * D_IN * D_HID,
            transcendentals=D_HID,
            bytes_accessed=(2 * D_IN * D_HID * 2          # bf16 w1 + w2
                            + B * D_IN * (2 + 4)          # x in (bf16) + out (f32)
                            + 3 * D_HID * 4 + D_IN * 4)), # b1/gamma/beta + b2
    )(x_bf, w1_bf, b1, gamma, beta, w2_bf)

    # Tiny [2, B, 256] cross-core partial-sum + fc2 bias (fused by XLA).
    return partials.sum(axis=0) + b2


def reference(x, w1, b1, gamma, beta, w2, b2):
    """Pure-JAX reference mirroring the kernel's bf16 weight/activation casts."""
    xf = x.astype(jnp.bfloat16).astype(jnp.float32)
    w1f = w1.astype(jnp.bfloat16).astype(jnp.float32)
    w2f = w2.astype(jnp.bfloat16).astype(jnp.float32)
    h = xf @ w1f + b1
    mean = h.mean(axis=0, keepdims=True)
    var = ((h - mean) ** 2).mean(axis=0, keepdims=True)
    h = (h - mean) / jnp.sqrt(var + BN_EPS) * gamma + beta
    h = jnp.maximum(h, 0.0)
    h = h.astype(jnp.bfloat16).astype(jnp.float32)
    return h @ w2f + b2


if __name__ == "__main__":
    key = jax.random.PRNGKey(0)
    kx, k1, kb1, k2, kb2 = jax.random.split(key, 5)

    B = 8  # small batch; feature dims (256, 4096) fixed by the module

    x = jax.random.normal(kx, (B, D_IN), dtype=jnp.float32)

    # PyTorch Linear stores weight as [out, in]; pre-transposed to [in, out].
    w1 = jax.random.normal(k1, (D_IN, D_HID), dtype=jnp.float32) * 0.05
    b1 = jax.random.normal(kb1, (1, D_HID), dtype=jnp.float32) * 0.05
    gamma = jnp.ones((1, D_HID), dtype=jnp.float32)   # BN weight init = 1
    beta = jnp.zeros((1, D_HID), dtype=jnp.float32)   # BN bias init = 0
    w2 = jax.random.normal(k2, (D_HID, D_IN), dtype=jnp.float32) * 0.02
    b2 = jax.random.normal(kb2, (1, D_IN), dtype=jnp.float32) * 0.05

    out = pred_mlp(x, w1, b1, gamma, beta, w2, b2)
    jax.block_until_ready(out)

    ref = reference(x, w1, b1, gamma, beta, w2, b2)
    assert out.shape == (B, D_IN)
    max_err = float(jnp.max(jnp.abs(out - ref)))
    assert jnp.allclose(out, ref, atol=2e-3, rtol=2e-3), f"mismatch: {max_err}"

    print("KERNEL_OK")
</pallas_src>

<mosaic_0001>
module attributes {stable_mosaic.version = 11 : i64} {
  func.func @pred_mlp_kernel(%arg0: i32, %arg1: i32, %arg2: memref<8x256xbf16, #tpu.memory_space<vmem>>, %arg3: memref<256x512xbf16, #tpu.memory_space<vmem>>, %arg4: memref<1x512xf32, #tpu.memory_space<vmem>>, %arg5: memref<1x512xf32, #tpu.memory_space<vmem>>, %arg6: memref<1x512xf32, #tpu.memory_space<vmem>>, %arg7: memref<512x256xbf16, #tpu.memory_space<vmem>>, %arg8: memref<1x8x256xf32, #tpu.memory_space<vmem>>, %arg9: memref<8x256xf32, #tpu.memory_space<vmem>>) attributes {dimension_semantics = [#tpu.dimension_semantics<parallel>, #tpu.dimension_semantics<arbitrary>], iteration_bounds = array<i64: 2, 4>, scalar_prefetch = 0 : i64, scratch_operands = 1 : i64, tpu.core_type = #tpu.core_type<tc>, window_params = [{pipeline_mode = #tpu.pipeline_mode<synchronous>, transform_indices = @transform_0, window_bounds = array<i64: 8, 256>}, {transform_indices = @transform_1, window_bounds = array<i64: 256, 512>}, {transform_indices = @transform_2, window_bounds = array<i64: 1, 512>}, {transform_indices = @transform_3, window_bounds = array<i64: 1, 512>}, {transform_indices = @transform_4, window_bounds = array<i64: 1, 512>}, {transform_indices = @transform_5, window_bounds = array<i64: 512, 256>}, {transform_indices = @transform_6, window_bounds = array<i64: 1, 8, 256>}]} {
    %c0_i32 = arith.constant 0 : i32
    %0 = arith.cmpi eq, %arg1, %c0_i32 : i32
    %1 = arith.extui %0 : i1 to i32
    %c0_i32_0 = arith.constant 0 : i32
    %2 = arith.cmpi ne, %1, %c0_i32_0 : i32
    scf.if %2 {
      %cst_24 = arith.constant 0.000000e+00 : f32
      %44 = vector.broadcast %cst_24 : f32 to vector<8x256xf32>
      %c0_25 = arith.constant 0 : index
      %c0_26 = arith.constant 0 : index
      %45 = vector.load %arg9[%c0_25, %c0_26] : memref<8x256xf32, #tpu.memory_space<vmem>>, vector<8x256xf32>
      tpu.vector_store %arg9[%c0_25, %c0_26], %44 {strides = array<i32>} : memref<8x256xf32, #tpu.memory_space<vmem>>, vector<8x256xf32>,
    } else {
    }
    %c0 = arith.constant 0 : index
    %c0_1 = arith.constant 0 : index
    %3 = vector.load %arg2[%c0, %c0_1] : memref<8x256xbf16, #tpu.memory_space<vmem>>, vector<8x256xbf16>
    %c0_2 = arith.constant 0 : index
    %c0_3 = arith.constant 0 : index
    %4 = vector.load %arg3[%c0_2, %c0_3] : memref<256x512xbf16, #tpu.memory_space<vmem>>, vector<256x512xbf16>
    %cst = arith.constant dense<0.000000e+00> : vector<8x512xf32>
    %5 = tpu.matmul %3, %4, %cst {dimension_numbers = #tpu.dot_dimension_numbers<[1], [0], [0], [1], [0, 0, 1, 1], [], []>} : vector<8x256xbf16>, vector<256x512xbf16>, vector<8x512xf32> -> vector<8x512xf32>
    %c0_4 = arith.constant 0 : index
    %c0_5 = arith.constant 0 : index
    %6 = vector.load %arg4[%c0_4, %c0_5] : memref<1x512xf32, #tpu.memory_space<vmem>>, vector<1x512xf32>
    %7 = vector.broadcast %6 : vector<1x512xf32> to vector<8x512xf32>
    %8 = arith.addf %5, %7 : vector<8x512xf32>
    %cst_6 = arith.constant dense<0.000000e+00> : vector<512xf32>
    %9 = vector.multi_reduction <add>, %8, %cst_6 [0] : vector<8x512xf32> to vector<512xf32>
    %10 = vector.shape_cast %9 : vector<512xf32> to vector<1x512xf32>
    %cst_7 = arith.constant 8.000000e+00 : f32
    %11 = vector.broadcast %cst_7 : f32 to vector<1x512xf32>
    %12 = arith.divf %10, %11 : vector<1x512xf32>
    %13 = arith.mulf %8, %8 : vector<8x512xf32>
    %cst_8 = arith.constant dense<0.000000e+00> : vector<512xf32>
    %14 = vector.multi_reduction <add>, %13, %cst_8 [0] : vector<8x512xf32> to vector<512xf32>
    %15 = vector.shape_cast %14 : vector<512xf32> to vector<1x512xf32>
    %cst_9 = arith.constant 8.000000e+00 : f32
    %16 = vector.broadcast %cst_9 : f32 to vector<1x512xf32>
    %17 = arith.divf %15, %16 : vector<1x512xf32>
    %18 = arith.mulf %12, %12 : vector<1x512xf32>
    %19 = arith.subf %17, %18 : vector<1x512xf32>
    %20 = vector.broadcast %12 : vector<1x512xf32> to vector<8x512xf32>
    %21 = arith.subf %8, %20 : vector<8x512xf32>
    %cst_10 = arith.constant 9.99999974E-6 : f32
    %22 = vector.broadcast %cst_10 : f32 to vector<1x512xf32>
    %23 = arith.addf %19, %22 : vector<1x512xf32>
    %24 = math.rsqrt %23 : vector<1x512xf32>
    %25 = vector.broadcast %24 : vector<1x512xf32> to vector<8x512xf32>
    %26 = arith.mulf %21, %25 : vector<8x512xf32>
    %c0_11 = arith.constant 0 : index
    %c0_12 = arith.constant 0 : index
    %27 = vector.load %arg5[%c0_11, %c0_12] : memref<1x512xf32, #tpu.memory_space<vmem>>, vector<1x512xf32>
    %28 = vector.broadcast %27 : vector<1x512xf32> to vector<8x512xf32>
    %29 = arith.mulf %26, %28 : vector<8x512xf32>
    %c0_13 = arith.constant 0 : index
    %c0_14 = arith.constant 0 : index
    %30 = vector.load %arg6[%c0_13, %c0_14] : memref<1x512xf32, #tpu.memory_space<vmem>>, vector<1x512xf32>
    %31 = vector.broadcast %30 : vector<1x512xf32> to vector<8x512xf32>
    %32 = arith.addf %29, %31 : vector<8x512xf32>
    %cst_15 = arith.constant 0.000000e+00 : f32
    %33 = vector.broadcast %cst_15 : f32 to vector<8x512xf32>
    %34 = arith.maximumf %32, %33 : vector<8x512xf32>
    %c0_16 = arith.constant 0 : index
    %c0_17 = arith.constant 0 : index
    %35 = vector.load %arg9[%c0_16, %c0_17] : memref<8x256xf32, #tpu.memory_space<vmem>>, vector<8x256xf32>
    %36 = arith.truncf %34 : vector<8x512xf32> to vector<8x512xbf16>
    %c0_18 = arith.constant 0 : index
    %c0_19 = arith.constant 0 : index
    %37 = vector.load %arg7[%c0_18, %c0_19] : memref<512x256xbf16, #tpu.memory_space<vmem>>, vector<512x256xbf16>
    %cst_20 = arith.constant dense<0.000000e+00> : vector<8x256xf32>
    %38 = tpu.matmul %36, %37, %cst_20 {dimension_numbers = #tpu.dot_dimension_numbers<[1], [0], [0], [1], [0, 0, 1, 1], [], []>} : vector<8x512xbf16>, vector<512x256xbf16>, vector<8x256xf32> -> vector<8x256xf32>
    %39 = arith.addf %35, %38 : vector<8x256xf32>
    %c0_21 = arith.constant 0 : index
    %c0_22 = arith.constant 0 : index
    %40 = vector.load %arg9[%c0_21, %c0_22] : memref<8x256xf32, #tpu.memory_space<vmem>>, vector<8x256xf32>
    tpu.vector_store %arg9[%c0_21, %c0_22], %39 {strides = array<i32>} : memref<8x256xf32, #tpu.memory_space<vmem>>, vector<8x256xf32>,
    %c3_i32 = arith.constant 3 : i32
    %41 = arith.cmpi eq, %arg1, %c3_i32 : i32
    %42 = arith.extui %41 : i1 to i32
    %c0_i32_23 = arith.constant 0 : i32
    %43 = arith.cmpi ne, %42, %c0_i32_23 : i32
    scf.if %43 {
      %c0_24 = arith.constant 0 : index
      %c0_25 = arith.constant 0 : index
      %44 = vector.load %arg9[%c0_24, %c0_25] : memref<8x256xf32, #tpu.memory_space<vmem>>, vector<8x256xf32>
      %c0_26 = arith.constant 0 : index
      %c0_27 = arith.constant 0 : index
      %c0_28 = arith.constant 0 : index
      %45 = vector.load %arg8[%c0_26, %c0_27, %c0_28] : memref<1x8x256xf32, #tpu.memory_space<vmem>>, vector<1x8x256xf32>
      %46 = vector.shape_cast %45 : vector<1x8x256xf32> to vector<8x256xf32>
      %47 = vector.shape_cast %44 : vector<8x256xf32> to vector<1x8x256xf32>
      tpu.vector_store %arg8[%c0_26, %c0_27, %c0_28], %47 {strides = array<i32>} : memref<1x8x256xf32, #tpu.memory_space<vmem>>, vector<1x8x256xf32>,
    } else {
    }
    return
  }
  func.func @transform_0(%arg0: i32, %arg1: i32) -> (i32, i32) {
    %c0_i32 = arith.constant 0 : i32
    %c0_i32_0 = arith.constant 0 : i32
    %c0_i32_1 = arith.constant 0 : i32
    return %c0_i32, %c0_i32_0 : i32, i32
  }
  func.func @transform_1(%arg0: i32, %arg1: i32) -> (i32, i32) {
    %c4_i32 = arith.constant 4 : i32
    %0 = arith.muli %arg0, %c4_i32 : i32
    %1 = arith.addi %0, %arg1 : i32
    %c0_i32 = arith.constant 0 : i32
    %c0_i32_0 = arith.constant 0 : i32
    return %c0_i32, %1 : i32, i32
  }
  func.func @transform_2(%arg0: i32, %arg1: i32) -> (i32, i32) {
    %c4_i32 = arith.constant 4 : i32
    %0 = arith.muli %arg0, %c4_i32 : i32
    %1 = arith.addi %0, %arg1 : i32
    %c0_i32 = arith.constant 0 : i32
    %c0_i32_0 = arith.constant 0 : i32
    return %c0_i32, %1 : i32, i32
  }
  func.func @transform_3(%arg0: i32, %arg1: i32) -> (i32, i32) {
    %c4_i32 = arith.constant 4 : i32
    %0 = arith.muli %arg0, %c4_i32 : i32
    %1 = arith.addi %0, %arg1 : i32
    %c0_i32 = arith.constant 0 : i32
    %c0_i32_0 = arith.constant 0 : i32
    return %c0_i32, %1 : i32, i32
  }
  func.func @transform_4(%arg0: i32, %arg1: i32) -> (i32, i32) {
    %c4_i32 = arith.constant 4 : i32
    %0 = arith.muli %arg0, %c4_i32 : i32
    %1 = arith.addi %0, %arg1 : i32
    %c0_i32 = arith.constant 0 : i32
    %c0_i32_0 = arith.constant 0 : i32
    return %c0_i32, %1 : i32, i32
  }
  func.func @transform_5(%arg0: i32, %arg1: i32) -> (i32, i32) {
    %c4_i32 = arith.constant 4 : i32
    %0 = arith.muli %arg0, %c4_i32 : i32
    %1 = arith.addi %0, %arg1 : i32
    %c0_i32 = arith.constant 0 : i32
    %c0_i32_0 = arith.constant 0 : i32
    return %1, %c0_i32 : i32, i32
  }
  func.func @transform_6(%arg0: i32, %arg1: i32) -> (i32, i32, i32) {
    %c0_i32 = arith.constant 0 : i32
    %c0_i32_0 = arith.constant 0 : i32
    %c0_i32_1 = arith.constant 0 : i32
    return %arg0, %c0_i32, %c0_i32_0 : i32, i32, i32
  }
}

</mosaic_0001>

<llo_original>
// kernel: pred_mlp.1
$region0: #{pred_mlp.1}
  #allocation0 [shape = 'u32[]', space=smem, size = 0x4, offset = 0x4, fixed_abs, tag = 'smem constant byte address 0x4 - core index']
  #allocation1 [shape = 'u32[72,128]{1,0:T(1,128)}', space=vmem, size = 0x9000, scoped, tag = 'internal scratch']
  #allocation2 [shape = 'f32[8,256]{1,0:T(8,128)}', space=vmem, size = 0x2000, scoped, tag = 'scratch operand']
  %s0 = inlined_call_operand.vmem [shape: bf16[8,256], index: 0, kind: input, shape index: {}]
  %s1 = inlined_call_operand.vmem [shape: bf16[256,4096], index: 1, kind: input, shape index: {}]
  %s2 = inlined_call_operand.vmem [shape: f32[1,4096], index: 2, kind: input, shape index: {}]
  %s3 = inlined_call_operand.vmem [shape: f32[1,4096], index: 3, kind: input, shape index: {}]
  %s4 = inlined_call_operand.vmem [shape: f32[1,4096], index: 4, kind: input, shape index: {}]
  %s5 = inlined_call_operand.vmem [shape: bf16[4096,256], index: 5, kind: input, shape index: {}]
  %s6 = inlined_call_operand.vmem [shape: f32[2,8,256], index: 6, kind: output, shape index: {}]
  %s7 = sld [smem:[#allocation0]]
  $region88: #{pred_mlp.1} parent=0
    _
  %s9 = ssub.s32 1, %s7
  %s10 = scalar_select 0, %s9, %s7
  $region1: #{pred_mlp.1} parent=0
    #allocation3 [shape = 'u8[524288]{0}', space=vmem, size = 0x80000, scoped, tag = 'input window, operand 1']
    loop: start=0, step=1, limit=10
    $region2: #{pred_mlp.1} parent=1 // loop_pre_header
      _
    $region3: #{pred_mlp.1} parent=1 // loop_header
      %s12 = sphi 0, %s16
      %p13 = scmp.ge.s32.totalorder %s12, 10
      %s19 = sphi 0, %s31
      %s20 = sphi 0, %s27
      %s21 = sphi 0, %s19
      %s22 = sphi 0, %s20
      %s23 = sphi 0, %s21
      %s24 = sphi 0, %s22
      %s32 = sphi 0, %s32
      %s34 = sphi 0, %s32
      %s35 = sphi 0, %s34
      %s49 = sphi 0, %s35
      %s59 = sphi 0, %s61
      %s62 = sphi 0, %s59
      %s63 = sphi 0, %s62
      %s79 = sphi 0, %s63
      %s89 = sphi 0, %s91
      %s92 = sphi 0, %s89
      %s93 = sphi 0, %s92
      %s109 = sphi 0, %s93
      %s119 = sphi 0, %s121
      %s122 = sphi 0, %s119
      %s123 = sphi 0, %s122
      %s139 = sphi 0, %s123
      %s149 = sphi 0, %s151
      %s152 = sphi 0, %s149
      %s153 = sphi 0, %s152
      %s169 = sphi 0, %s153
      %s179 = sphi 0, %s181
      %s182 = sphi 0, %s179
      %s183 = sphi 0, %s182
      %s199 = sphi 0, %s183
      %s205 = sphi 0, %s207
      %s208 = sphi 0, %s205
      %s209 = sphi 0, %s208
      %s225 = sphi 0, %s209
    $region4: #{pred_mlp.1} parent=1 // loop_header_branch
      %15 = sbr.rel (%p13) target = $region8
    $region5: #{pred_mlp.1} parent=1 // loop_body
      %s17 = ssub.s32 %s12, 1
      %s18 = ssub.s32 %s12, 2
      %s25 = sadd.s32 1, %s20
      %p26 = scmp.ge.s32.totalorder %s25, 4
      %s27 = scalar_select %p26, 0, %s25
      %s28 = sadd.s32 1, %s19
      %s29 = scalar_select %p26, %s28, %s19
      %p30 = scmp.ge.s32.totalorder %s29, 2
      %s31 = scalar_select %p30, 0, %s29
      %s33 = sadd.s32 %s32, 1
      %p36 = scmp.eq.s32.totalorder %s12, 7
      %p37 = scmp.ne.s32.totalorder %s32, %s34
      %p38 = scmp.eq.s32.totalorder %s12, 0
      %p39 = por %p37, %p38
      %p40 = scmp.ne.s32.totalorder %s32, %s34
      %p41 = scmp.eq.s32.totalorder %s17, 7
      %p42 = por %p40, %p41
      %p43 = scmp.ne.s32.totalorder %s34, %s35
      %p44 = scmp.eq.s32.totalorder %s17, 0
      %p45 = por %p43, %p44
      %p46 = scmp.ne.s32.totalorder %s34, %s35
      %p47 = scmp.eq.s32.totalorder %s18, 7
      %p48 = por %p46, %p47
      %p50 = scmp.ne.s32.totalorder %s35, %s49
      %p51 = scmp.eq.s32.totalorder %s18, 0
      %p52 = por %p50, %p51
      %s53 = smul.u32 %s19, 4
      %s54 = sadd.s32 %s53, %s20
      %s55 = smul.u32 %s31, 4
      %s56 = sadd.s32 %s55, %s27
      %s57 = ssub.s32 %s54, %s56
      %p58 = scmp.eq.s32.totalorder %s57, 0
      %s60 = sadd.s32 %s59, 1
      %s61 = scalar_select %p58, %s59, %s60
      %p64 = pneg %p58
      %p65 = scmp.eq.s32.totalorder %s12, 7
      %p66 = por %p64, %p65
      %p67 = scmp.ne.s32.totalorder %s59, %s62
      %p68 = scmp.eq.s32.totalorder %s12, 0
      %p69 = por %p67, %p68
      %p70 = scmp.ne.s32.totalorder %s59, %s62
      %p71 = scmp.eq.s32.totalorder %s17, 7
      %p72 = por %p70, %p71
      %p73 = scmp.ne.s32.totalorder %s62, %s63
      %p74 = scmp.eq.s32.totalorder %s17, 0
      %p75 = por %p73, %p74
      %p76 = scmp.ne.s32.totalorder %s62, %s63
      %p77 = scmp.eq.s32.totalorder %s18, 7
      %p78 = por %p76, %p77
      %p80 = scmp.ne.s32.totalorder %s63, %s79
      %p81 = scmp.eq.s32.totalorder %s18, 0
      %p82 = por %p80, %p81
      %s83 = smul.u32 %s19, 4
      %s84 = sadd.s32 %s83, %s20
      %s85 = smul.u32 %s31, 4
      %s86 = sadd.s32 %s85, %s27
      %s87 = ssub.s32 %s84, %s86
      %p88 = scmp.eq.s32.totalorder %s87, 0
      %s90 = sadd.s32 %s89, 1
      %s91 = scalar_select %p88, %s89, %s90
      %p94 = pneg %p88
      %p95 = scmp.eq.s32.totalorder %s12, 7
      %p96 = por %p94, %p95
      %p97 = scmp.ne.s32.totalorder %s89, %s92
      %p98 = scmp.eq.s32.totalorder %s12, 0
      %p99 = por %p97, %p98
      %p100 = scmp.ne.s32.totalorder %s89, %s92
      %p101 = scmp.eq.s32.totalorder %s17, 7
      %p102 = por %p100, %p101
      %p103 = scmp.ne.s32.totalorder %s92, %s93
      %p104 = scmp.eq.s32.totalorder %s17, 0
      %p105 = por %p103, %p104
      %p106 = scmp.ne.s32.totalorder %s92, %s93
      %p107 = scmp.eq.s32.totalorder %s18, 7
      %p108 = por %p106, %p107
      %p110 = scmp.ne.s32.totalorder %s93, %s109
      %p111 = scmp.eq.s32.totalorder %s18, 0
      %p112 = por %p110, %p111
      %s113 = smul.u32 %s19, 4
      %s114 = sadd.s32 %s113, %s20
      %s115 = smul.u32 %s31, 4
      %s116 = sadd.s32 %s115, %s27
      %s117 = ssub.s32 %s114, %s116
      %p118 = scmp.eq.s32.totalorder %s117, 0
      %s120 = sadd.s32 %s119, 1
      %s121 = scalar_select %p118, %s119, %s120
      %p124 = pneg %p118
      %p125 = scmp.eq.s32.totalorder %s12, 7
      %p126 = por %p124, %p125
      %p127 = scmp.ne.s32.totalorder %s119, %s122
      %p128 = scmp.eq.s32.totalorder %s12, 0
      %p129 = por %p127, %p128
      %p130 = scmp.ne.s32.totalorder %s119, %s122
      %p131 = scmp.eq.s32.totalorder %s17, 7
      %p132 = por %p130, %p131
      %p133 = scmp.ne.s32.totalorder %s122, %s123
      %p134 = scmp.eq.s32.totalorder %s17, 0
      %p135 = por %p133, %p134
      %p136 = scmp.ne.s32.totalorder %s122, %s123
      %p137 = scmp.eq.s32.totalorder %s18, 7
      %p138 = por %p136, %p137
      %p140 = scmp.ne.s32.totalorder %s123, %s139
      %p141 = scmp.eq.s32.totalorder %s18, 0
      %p142 = por %p140, %p141
      %s143 = smul.u32 %s19, 4
      %s144 = sadd.s32 %s143, %s20
      %s145 = smul.u32 %s31, 4
      %s146 = sadd.s32 %s145, %s27
      %s147 = ssub.s32 %s144, %s146
      %p148 = scmp.eq.s32.totalorder %s147, 0
      %s150 = sadd.s32 %s149, 1
      %s151 = scalar_select %p148, %s149, %s150
      %p154 = pneg %p148
      %p155 = scmp.eq.s32.totalorder %s12, 7
      %p156 = por %p154, %p155
      %p157 = scmp.ne.s32.totalorder %s149, %s152
      %p158 = scmp.eq.s32.totalorder %s12, 0
      %p159 = por %p157, %p158
      %p160 = scmp.ne.s32.totalorder %s149, %s152
      %p161 = scmp.eq.s32.totalorder %s17, 7
      %p162 = por %p160, %p161
      %p163 = scmp.ne.s32.totalorder %s152, %s153
      %p164 = scmp.eq.s32.totalorder %s17, 0
      %p165 = por %p163, %p164
      %p166 = scmp.ne.s32.totalorder %s152, %s153
      %p167 = scmp.eq.s32.totalorder %s18, 7
      %p168 = por %p166, %p167
      %p170 = scmp.ne.s32.totalorder %s153, %s169
      %p171 = scmp.eq.s32.totalorder %s18, 0
      %p172 = por %p170, %p171
      %s173 = smul.u32 %s19, 4
      %s174 = sadd.s32 %s173, %s20
      %s175 = smul.u32 %s31, 4
      %s176 = sadd.s32 %s175, %s27
      %s177 = ssub.s32 %s174, %s176
      %p178 = scmp.eq.s32.totalorder %s177, 0
      %s180 = sadd.s32 %s179, 1
      %s181 = scalar_select %p178, %s179, %s180
      %p184 = pneg %p178
      %p185 = scmp.eq.s32.totalorder %s12, 7
      %p186 = por %p184, %p185
      %p187 = scmp.ne.s32.totalorder %s179, %s182
      %p188 = scmp.eq.s32.totalorder %s12, 0
      %p189 = por %p187, %p188
      %p190 = scmp.ne.s32.totalorder %s179, %s182
      %p191 = scmp.eq.s32.totalorder %s17, 7
      %p192 = por %p190, %p191
      %p193 = scmp.ne.s32.totalorder %s182, %s183
      %p194 = scmp.eq.s32.totalorder %s17, 0
      %p195 = por %p193, %p194
      %p196 = scmp.ne.s32.totalorder %s182, %s183
      %p197 = scmp.eq.s32.totalorder %s18, 7
      %p198 = por %p196, %p197
      %p200 = scmp.ne.s32.totalorder %s183, %s199
      %p201 = scmp.eq.s32.totalorder %s18, 0
      %p202 = por %p200, %p201
      %s203 = ssub.s32 %s19, %s31
      %p204 = scmp.eq.s32.totalorder %s203, 0
      %s206 = sadd.s32 %s205, 1
      %s207 = scalar_select %p204, %s205, %s206
      %p210 = pneg %p204
      %p211 = scmp.eq.s32.totalorder %s12, 7
      %p212 = por %p210, %p211
      %p213 = scmp.ne.s32.totalorder %s205, %s208
      %p214 = scmp.eq.s32.totalorder %s12, 0
      %p215 = por %p213, %p214
      %p216 = scmp.ne.s32.totalorder %s205, %s208
      %p217 = scmp.eq.s32.totalorder %s17, 7
      %p218 = por %p216, %p217
      %p219 = scmp.ne.s32.totalorder %s208, %s209
      %p220 = scmp.eq.s32.totalorder %s17, 0
      %p221 = por %p219, %p220
      %p222 = scmp.ne.s32.totalorder %s208, %s209
      %p223 = scmp.eq.s32.totalorder %s18, 7
      %p224 = por %p222, %p223
      %p226 = scmp.ne.s32.totalorder %s209, %s225
      %p227 = scmp.eq.s32.totalorder %s18, 0
      %p228 = por %p226, %p227
      %p229 = scmp.le.s32.totalorder 1, %s12
      %p230 = scmp.lt.s32.totalorder %s12, 9
      %p231 = pnand %p229, %p230
      %p232 = pneg %p231
      // Predicated region
      $region9: #{pred_mlp.1} parent=5 // pred_check
        _
      $region10: #{pred_mlp.1} parent=5 // pred_check_branch
        %234 = sbr.rel (%p231) target = $region12
      $region11: #{pred_mlp.1} parent=5 // pred_region
        %s235 = ssub.s32 %s12, 1
        // Predicated region
        $region13: #{pred_mlp.1} parent=11 // pred_check
          %p236 = pneg %p45
        $region14: #{pred_mlp.1} parent=11 // pred_check_branch
          %238 = sbr.rel (%p236) target = $region16
        $region15: #{pred_mlp.1} parent=11 // pred_region
          _
        $region16: #{pred_mlp.1} parent=11 // pred_fallthru
          _
      $region12: #{pred_mlp.1} parent=5 // pred_fallthru
        _
      %p239 = scmp.lt.s32.totalorder %s12, 8
      // Predicated region
      $region17: #{pred_mlp.1} parent=5 // pred_check
        %p240 = pneg %p239
      $region18: #{pred_mlp.1} parent=5 // pred_check_branch
        %242 = sbr.rel (%p240) target = $region20
      $region19: #{pred_mlp.1} parent=5 // pred_region
        // Predicated region
        $region21: #{pred_mlp.1} parent=19 // pred_check
          %p243 = pneg %p69
        $region22: #{pred_mlp.1} parent=19 // pred_check_branch
          %245 = sbr.rel (%p243) target = $region24
        $region23: #{pred_mlp.1} parent=19 // pred_region
          %s246 = sand.u32 %s59, 1
          %s247 = sand.u32 %s59, 1
          %s248 = smul.addr %s247, 512
          %s249 = scalar_lea.vmem [#allocation3], %s248
          %s250 = smul.u32 %s19, 4
          %s251 = sadd.s32 %s250, %s20
          %s252 = smul.u32 4, %s251
          %s253 = smul.addr %s252, 4
          %s254 = scalar_lea.vmem %s1, %s253
          // Predicated region
          $region25: #{pred_mlp.1} parent=23 // pred_check
            _
          $region26: #{pred_mlp.1} parent=23 // pred_check_branch
            %256 = sbr.rel (0) target = $region28
          $region27: #{pred_mlp.1} parent=23 // pred_region
            // Predicated region
            $region29: #{pred_mlp.1} parent=27 // pred_check
              _
            $region30: #{pred_mlp.1} parent=27 // pred_check_branch
              %258 = sbr.rel (0) target = $region32
            $region31: #{pred_mlp.1} parent=27 // pred_region
              loop: start=0, step=1, limit=1
              $region33: #{pred_mlp.1} parent=31 // loop_pre_header
                _
              $region34: #{pred_mlp.1} parent=31 // loop_header
                %s260 = sphi 0, %s264
                %p261 = scmp.ge.s32.totalorder %s260, 1
                %s265 = sphi %s254, %s254
                %s266 = sphi %s249, %s249
              $region35: #{pred_mlp.1} parent=31 // loop_header_branch
                %263 = sbr.rel (%p261) target = $region39
              $region36: #{pred_mlp.1} parent=31 // loop_body
                %v267 = vld [vmem:[%s265] sm:$0xff]
                %268 = vst [vmem:[%s266] sm:$0xff] %v267
                %v269 = vld [vmem:[%s265 + $0x8] sm:$0xff]
                %270 = vst [vmem:[%s266 + $0x8] sm:$0xff] %v269
                %v271 = vld [vmem:[%s265 + $0x80] sm:$0xff]
                %272 = vst [vmem:[%s266 + $0x10] sm:$0xff] %v271
                %v273 = vld [vmem:[%s265 + $0x88] sm:$0xff]
                %274 = vst [vmem:[%s266 + $0x18] sm:$0xff] %v273
                %v275 = vld [vmem:[%s265 + $0x100] sm:$0xff]
                %276 = vst [vmem:[%s266 + $0x20] sm:$0xff] %v275
                %v277 = vld [vmem:[%s265 + $0x108] sm:$0xff]
                %278 = vst [vmem:[%s266 + $0x28] sm:$0xff] %v277
                %v279 = vld [vmem:[%s265 + $0x180] sm:$0xff]
                %280 = vst [vmem:[%s266 + $0x30] sm:$0xff] %v279
                %v281 = vld [vmem:[%s265 + $0x188] sm:$0xff]
                %282 = vst [vmem:[%s266 + $0x38] sm:$0xff] %v281
                %v283 = vld [vmem:[%s265 + $0x200] sm:$0xff]
                %284 = vst [vmem:[%s266 + $0x40] sm:$0xff] %v283
                %v285 = vld [vmem:[%s265 + $0x208] sm:$0xff]
                %286 = vst [vmem:[%s266 + $0x48] sm:$0xff] %v285
                %v287 = vld [vmem:[%s265 + $0x280] sm:$0xff]
                %288 = vst [vmem:[%s266 + $0x50] sm:$0xff] %v287
                %v289 = vld [vmem:[%s265 + $0x288] sm:$0xff]
                %290 = vst [vmem:[%s266 + $0x58] sm:$0xff] %v289
                %v291 = vld [vmem:[%s265 + $0x300] sm:$0xff]
                %292 = vst [vmem:[%s266 + $0x60] sm:$0xff] %v291
                %v293 = vld [vmem:[%s265 + $0x308] sm:$0xff]
                %294 = vst [vmem:[%s266 + $0x68] sm:$0xff] %v293
                %v295 = vld [vmem:[%s265 + $0x380] sm:$0xff]
                %296 = vst [vmem:[%s266 + $0x70] sm:$0xff] %v295
                %v297 = vld [vmem:[%s265 + $0x388] sm:$0xff]
                %298 = vst [vmem:[%s266 + $0x78] sm:$0xff] %v297
                %v299 = vld [vmem:[%s265 + $0x400] sm:$0xff]
                %300 = vst [vmem:[%s266 + $0x80] sm:$0xff] %v299
                %v301 = vld [vmem:[%s265 + $0x408] sm:$0xff]
                %302 = vst [vmem:[%s266 + $0x88] sm:$0xff] %v301
                %v303 = vld [vmem:[%s265 + $0x480] sm:$0xff]
                %304 = vst [vmem:[%s266 + $0x90] sm:$0xff] %v303
                %v305 = vld [vmem:[%s265 + $0x488] sm:$0xff]
                %306 = vst [vmem:[%s266 + $0x98] sm:$0xff] %v305
                %v307 = vld [vmem:[%s265 + $0x500] sm:$0xff]
                %308 = vst [vmem:[%s266 + $0xa0] sm:$0xff] %v307
                %v309 = vld [vmem:[%s265 + $0x508] sm:$0xff]
                %310 = vst [vmem:[%s266 + $0xa8] sm:$0xff] %v309
                %v311 = vld [vmem:[%s265 + $0x580] sm:$0xff]
                %312 = vst [vmem:[%s266 + $0xb0] sm:$0xff] %v311
                %v313 = vld [vmem:[%s265 + $0x588] sm:$0xff]
                %314 = vst [vmem:[%s266 + $0xb8] sm:$0xff] %v313
                %v315 = vld [vmem:[%s265 + $0x600] sm:$0xff]
                %316 = vst [vmem:[%s266 + $0xc0] sm:$0xff] %v315
                %v317 = vld [vmem:[%s265 + $0x608] sm:$0xff]
                %318 = vst [vmem:[%s266 + $0xc8] sm:$0xff] %v317
                %v319 = vld [vmem:[%s265 + $0x680] sm:$0xff]
                %320 = vst [vmem:[%s266 + $0xd0] sm:$0xff] %v319
                %v321 = vld [vmem:[%s265 + $0x688] sm:$0xff]
                %322 = vst [vmem:[%s266 + $0xd8] sm:$0xff] %v321
                %v323 = vld [vmem:[%s265 + $0x700] sm:$0xff]
                %324 = vst [vmem:[%s266 + $0xe0] sm:$0xff] %v323
                %v325 = vld [vmem:[%s265 + $0x708] sm:$0xff]
                %326 = vst [vmem:[%s266 + $0xe8] sm:$0xff] %v325
                %v327 = vld [vmem:[%s265 + $0x780] sm:$0xff]
                %328 = vst [vmem:[%s266 + $0xf0] sm:$0xff] %v327
                %v329 = vld [vmem:[%s265 + $0x788] sm:$0xff]
                %330 = vst [vmem:[%s266 + $0xf8] sm:$0xff] %v329
                %v331 = vld [vmem:[%s265 + $0x800] sm:$0xff]
                %332 = vst [vmem:[%s266 + $0x100] sm:$0xff] %v331
                %v333 = vld [vmem:[%s265 + $0x808] sm:$0xff]
                %334 = vst [vmem:[%s266 + $0x108] sm:$0xff] %v333
                %v335 = vld [vmem:[%s265 + $0x880] sm:$0xff]
                %336 = vst [vmem:[%s266 + $0x110] sm:$0xff] %v335
                %v337 = vld [vmem:[%s265 + $0x888] sm:$0xff]
                %338 = vst [vmem:[%s266 + $0x118] sm:$0xff] %v337
                %v339 = vld [vmem:[%s265 + $0x900] sm:$0xff]
                %340 = vst [vmem:[%s266 + $0x120] sm:$0xff] %v339
                %v341 = vld [vmem:[%s265 + $0x908] sm:$0xff]
                %342 = vst [vmem:[%s266 + $0x128] sm:$0xff] %v341
                %v343 = vld [vmem:[%s265 + $0x980] sm:$0xff]
                %344 = vst [vmem:[%s266 + $0x130] sm:$0xff] %v343
                %v345 = vld [vmem:[%s265 + $0x988] sm:$0xff]
                %346 = vst [vmem:[%s266 + $0x138] sm:$0xff] %v345
                %v347 = vld [vmem:[%s265 + $0xa00] sm:$0xff]
                %348 = vst [vmem:[%s266 + $0x140] sm:$0xff] %v347
                %v349 = vld [vmem:[%s265 + $0xa08] sm:$0xff]
                %350 = vst [vmem:[%s266 + $0x148] sm:$0xff] %v349
                %v351 = vld [vmem:[%s265 + $0xa80] sm:$0xff]
                %352 = vst [vmem:[%s266 + $0x150] sm:$0xff] %v351
                %v353 = vld [vmem:[%s265 + $0xa88] sm:$0xff]
                %354 = vst [vmem:[%s266 + $0x158] sm:$0xff] %v353
                %v355 = vld [vmem:[%s265 + $0xb00] sm:$0xff]
                %356 = vst [vmem:[%s266 + $0x160] sm:$0xff] %v355
                %v357 = vld [vmem:[%s265 + $0xb08] sm:$0xff]
                %358 = vst [vmem:[%s266 + $0x168] sm:$0xff] %v357
                %v359 = vld [vmem:[%s265 + $0xb80] sm:$0xff]
                %360 = vst [vmem:[%s266 + $0x170] sm:$0xff] %v359
                %v361 = vld [vmem:[%s265 + $0xb88] sm:$0xff]
                %362 = vst [vmem:[%s266 + $0x178] sm:$0xff] %v361
                %v363 = vld [vmem:[%s265 + $0xc00] sm:$0xff]
                %364 = vst [vmem:[%s266 + $0x180] sm:$0xff] %v363
                %v365 = vld [vmem:[%s265 + $0xc08] sm:$0xff]
                %366 = vst [vmem:[%s266 + $0x188] sm:$0xff] %v365
                %v367 = vld [vmem:[%s265 + $0xc80] sm:$0xff]
                %368 = vst [vmem:[%s266 + $0x190] sm:$0xff] %v367
                %v369 = vld [vmem:[%s265 + $0xc88] sm:$0xff]
                %370 = vst [vmem:[%s266 + $0x198] sm:$0xff] %v369
                %v371 = vld [vmem:[%s265 + $0xd00] sm:$0xff]
                %372 = vst [vmem:[%s266 + $0x1a0] sm:$0xff] %v371
                %v373 = vld [vmem:[%s265 + $0xd08] sm:$0xff]
                %374 = vst [vmem:[%s266 + $0x1a8] sm:$0xff] %v373
                %v375 = vld [vmem:[%s265 + $0xd80] sm:$0xff]
                %376 = vst [vmem:[%s266 + $0x1b0] sm:$0xff] %v375
                %v377 = vld [vmem:[%s265 + $0xd88] sm:$0xff]
                %378 = vst [vmem:[%s266 + $0x1b8] sm:$0xff] %v377
                %v379 = vld [vmem:[%s265 + $0xe00] sm:$0xff]
                %380 = vst [vmem:[%s266 + $0x1c0] sm:$0xff] %v379
                %v381 = vld [vmem:[%s265 + $0xe08] sm:$0xff]
                %382 = vst [vmem:[%s266 + $0x1c8] sm:$0xff] %v381
                %v383 = vld [vmem:[%s265 + $0xe80] sm:$0xff]
                %384 = vst [vmem:[%s266 + $0x1d0] sm:$0xff] %v383
                %v385 = vld [vmem:[%s265 + $0xe88] sm:$0xff]
                %386 = vst [vmem:[%s266 + $0x1d8] sm:$0xff] %v385
                %v387 = vld [vmem:[%s265 + $0xf00] sm:$0xff]
                %388 = vst [vmem:[%s266 + $0x1e0] sm:$0xff] %v387
                %v389 = vld [vmem:[%s265 + $0xf08] sm:$0xff]
                %390 = vst [vmem:[%s266 + $0x1e8] sm:$0xff] %v389
                %v391 = vld [vmem:[%s265 + $0xf80] sm:$0xff]
                %392 = vst [vmem:[%s266 + $0x1f0] sm:$0xff] %v391
                %v393 = vld [vmem:[%s265 + $0xf88] sm:$0xff]
                %394 = vst [vmem:[%s266 + $0x1f8] sm:$0xff] %v393
              $region37: #{pred_mlp.1} parent=31 // loop_footer
                %s264 = sadd.s32 1, %s260
              $region38: #{pred_mlp.1} parent=31 // loop_footer_branch
                %259 = sbr.rel target = $region34
              $region39: #{pred_mlp.1} parent=31 // loop_exit
                _
            $region32: #{pred_mlp.1} parent=27 // pred_fallthru
              _
            // Predicated region
            $region40: #{pred_mlp.1} parent=27 // pred_check
              _
            $region41: #{pred_mlp.1} parent=27 // pred_check_branch
              %396 = sbr.rel target = $region43
            $region42: #{pred_mlp.1} parent=27 // pred_region
              _
            $region43: #{pred_mlp.1} parent=27 // pred_fallthru
              _
          $region28: #{pred_mlp.1} parent=23 // pred_fallthru
            _
          %397 = vnop
        $region24: #{pred_mlp.1} parent=19 // pred_fallthru
          _
        // Predicated region
        $region44: #{pred_mlp.1} parent=19 // pred_check
          %p398 = pneg %p99
        $region45: #{pred_mlp.1} parent=19 // pred_check_branch
          %400 = sbr.rel (%p398) target = $region47
        $region46: #{pred_mlp.1} parent=19 // pred_region
          %s401 = smul.u32 %s19, 4
          %s402 = sadd.s32 %s401, %s20
          %s403 = smul.u32 4, %s402
          %p404 = scmp.lt.s32.totalorder %s403, 31
          %s405 = scalar_select %p404, %s403, 31
          %s406 = scalar_lea.vmem %s2, %s405
          %s407 = smul.u32 %s19, 4
          %s408 = sadd.s32 %s407, %s20
          %s409 = smul.u32 4, %s408
        $region47: #{pred_mlp.1} parent=19 // pred_fallthru
          _
        // Predicated region
        $region48: #{pred_mlp.1} parent=19 // pred_check
          %p410 = pneg %p129
        $region49: #{pred_mlp.1} parent=19 // pred_check_branch
          %412 = sbr.rel (%p410) target = $region51
        $region50: #{pred_mlp.1} parent=19 // pred_region
          %s413 = smul.u32 %s19, 4
          %s414 = sadd.s32 %s413, %s20
          %s415 = smul.u32 4, %s414
          %p416 = scmp.lt.s32.totalorder %s415, 31
          %s417 = scalar_select %p416, %s415, 31
          %s418 = scalar_lea.vmem %s3, %s417
          %s419 = smul.u32 %s19, 4
          %s420 = sadd.s32 %s419, %s20
          %s421 = smul.u32 4, %s420
        $region51: #{pred_mlp.1} parent=19 // pred_fallthru
          _
        // Predicated region
        $region52: #{pred_mlp.1} parent=19 // pred_check
          %p422 = pneg %p159
        $region53: #{pred_mlp.1} parent=19 // pred_check_branch
          %424 = sbr.rel (%p422) target = $region55
        $region54: #{pred_mlp.1} parent=19 // pred_region
          %s425 = smul.u32 %s19, 4
          %s426 = sadd.s32 %s425, %s20
          %s427 = smul.u32 4, %s426
          %p428 = scmp.lt.s32.totalorder %s427, 31
          %s429 = scalar_select %p428, %s427, 31
          %s430 = scalar_lea.vmem %s4, %s429
          %s431 = smul.u32 %s19, 4
          %s432 = sadd.s32 %s431, %s20
          %s433 = smul.u32 4, %s432
        $region55: #{pred_mlp.1} parent=19 // pred_fallthru
          _
        // Predicated region
        $region56: #{pred_mlp.1} parent=19 // pred_check
          %p434 = pneg %p189
        $region57: #{pred_mlp.1} parent=19 // pred_check_branch
          %436 = sbr.rel (%p434) target = $region59
        $region58: #{pred_mlp.1} parent=19 // pred_region
          %s437 = smul.u32 %s19, 4
          %s438 = sadd.s32 %s437, %s20
          %s439 = smul.u32 64, %s438
          %p440 = scmp.lt.s32.totalorder %s439, 511
          %s441 = scalar_select %p440, %s439, 511
          %s442 = smul.addr %s441, 2
          %s443 = smul.addr %s442, 4
          %s444 = scalar_lea.vmem %s5, %s443
          %s445 = smul.u32 %s19, 4
          %s446 = sadd.s32 %s445, %s20
          %s447 = smul.u32 64, %s446
        $region59: #{pred_mlp.1} parent=19 // pred_fallthru
          _
      $region20: #{pred_mlp.1} parent=5 // pred_fallthru
        _
      %p448 = scmp.le.s32.totalorder 1, %s12
      %p449 = scmp.lt.s32.totalorder %s12, 9
      %p450 = pnand %p448, %p449
      %p451 = pneg %p450
      // Predicated region
      $region60: #{pred_mlp.1} parent=5 // pred_check
        _
      $region61: #{pred_mlp.1} parent=5 // pred_check_branch
        %453 = sbr.rel (%p450) target = $region63
      $region62: #{pred_mlp.1} parent=5 // pred_region
        %s454 = ssub.s32 %s12, 1
        %s455 = sand.u32 %s62, 1
        %s456 = sand.u32 %s62, 1
        %s457 = smul.addr %s456, 512
        %s458 = scalar_lea.vmem [#allocation3], %s457
        // Predicated region
        $region64: #{pred_mlp.1} parent=62 // pred_check
          %p459 = pneg %p75
        $region65: #{pred_mlp.1} parent=62 // pred_check_branch
          %461 = sbr.rel (%p459) target = $region67
        $region66: #{pred_mlp.1} parent=62 // pred_region
          _
        $region67: #{pred_mlp.1} parent=62 // pred_fallthru
          _
        %p462 = pneg %p45
        %p463 = pneg %p42
        %s464 = sand.u32 %s62, 1
        %s465 = sand.u32 %s62, 1
        %s466 = smul.addr %s465, 512
        %s467 = scalar_lea.vmem [#allocation3], %s466
        %p468 = pneg %p75
        %p469 = pneg %p72
        %s470 = smul.u32 %s21, 4
        %s471 = sadd.s32 %s470, %s22
        %s472 = smul.u32 4, %s471
        %p473 = scmp.lt.s32.totalorder %s472, 31
        %s474 = scalar_select %p473, %s472, 31
        %s475 = scalar_lea.vmem %s2, %s474
        %p476 = pneg %p105
        %p477 = pneg %p102
        %s478 = smul.u32 %s21, 4
        %s479 = sadd.s32 %s478, %s22
        %s480 = smul.u32 4, %s479
        %p481 = scmp.lt.s32.totalorder %s480, 31
        %s482 = scalar_select %p481, %s480, 31
        %s483 = scalar_lea.vmem %s3, %s482
        %p484 = pneg %p135
        %p485 = pneg %p132
        %s486 = smul.u32 %s21, 4
        %s487 = sadd.s32 %s486, %s22
        %s488 = smul.u32 4, %s487
        %p489 = scmp.lt.s32.totalorder %s488, 31
        %s490 = scalar_select %p489, %s488, 31
        %s491 = scalar_lea.vmem %s4, %s490
        %p492 = pneg %p165
        %p493 = pneg %p162
        %s494 = smul.u32 %s21, 4
        %s495 = sadd.s32 %s494, %s22
        %s496 = smul.u32 64, %s495
        %p497 = scmp.lt.s32.totalorder %s496, 511
        %s498 = scalar_select %p497, %s496, 511
        %s499 = smul.addr %s498, 2
        %s500 = smul.addr %s499, 4
        %s501 = scalar_lea.vmem %s5, %s500
        %p502 = pneg %p195
        %p503 = pneg %p192
        %p504 = pneg %p221
        %p505 = pneg %p218
        %p506 = scmp.lt.s32.totalorder %s21, 1
        %s507 = scalar_select %p506, %s21, 1
        %s508 = smul.addr %s507, 2
        %s509 = smul.addr %s508, 8
        %s510 = scalar_lea.vmem %s6, %s509
        %s511 = smul.u32 %s21, 4
        %s512 = sadd.s32 %s511, %s22
        %s513 = smul.u32 4, %s512
        %s514 = smul.u32 %s21, 4
        %s515 = sadd.s32 %s514, %s22
        %s516 = smul.u32 4, %s515
        %p517 = scmp.lt.s32.totalorder %s516, 31
        %s518 = scalar_select %p517, %s516, 31
        %s519 = scalar_lea.vmem %s2, %s518
        %s520 = smul.u32 %s21, 4
        %s521 = sadd.s32 %s520, %s22
        %s522 = smul.u32 4, %s521
        %s523 = smul.u32 %s21, 4
        %s524 = sadd.s32 %s523, %s22
        %s525 = smul.u32 4, %s524
        %p526 = scmp.lt.s32.totalorder %s525, 31
        %s527 = scalar_select %p526, %s525, 31
        %s528 = scalar_lea.vmem %s3, %s527
        %s529 = smul.u32 %s21, 4
        %s530 = sadd.s32 %s529, %s22
        %s531 = smul.u32 4, %s530
        %s532 = smul.u32 %s21, 4
        %s533 = sadd.s32 %s532, %s22
        %s534 = smul.u32 4, %s533
        %p535 = scmp.lt.s32.totalorder %s534, 31
        %s536 = scalar_select %p535, %s534, 31
        %s537 = scalar_lea.vmem %s4, %s536
        %s538 = smul.u32 %s21, 4
        %s539 = sadd.s32 %s538, %s22
        %s540 = smul.u32 4, %s539
        %s541 = smul.u32 %s21, 4
        %s542 = sadd.s32 %s541, %s22
        %s543 = smul.u32 64, %s542
        %p544 = scmp.lt.s32.totalorder %s543, 511
        %s545 = scalar_select %p544, %s543, 511
        %s546 = smul.addr %s545, 2
        %s547 = smul.addr %s546, 4
        %s548 = scalar_lea.vmem %s5, %s547
        %s549 = smul.u32 %s21, 4
        %s550 = sadd.s32 %s549, %s22
        %s551 = smul.u32 64, %s550
        %p552 = scmp.lt.s32.totalorder %s21, 1
        %s553 = scalar_select %p552, %s21, 1
        %s554 = smul.addr %s553, 2
        %s555 = smul.addr %s554, 8
        %s556 = scalar_lea.vmem %s6, %s555
        %p557 = scmp.eq.s32.totalorder %s22, 0
        // Predicated region
        $region68: #{pred_mlp.1} parent=62 // pred_check
          %p558 = pneg %p557
        $region69: #{pred_mlp.1} parent=62 // pred_check_branch
          %560 = sbr.rel (%p558) target = $region71
        $region70: #{pred_mlp.1} parent=62 // pred_region
          %561 = vst [vmem:[#allocation2] sm:$0xff] 0.0
          %562 = vst [vmem:[#allocation2 + $0x8] sm:$0xff] 0.0
        $region71: #{pred_mlp.1} parent=62 // pred_fallthru
          _
        %v563 = vld [vmem:[%s0] sm:$0xff]
        %v564 = vld [vmem:[%s458] sm:$0xff]
        %v565 = vld [vmem:[%s458 + $0x8] sm:$0xff]
        %v566 = vld [vmem:[%s458 + $0x10] sm:$0xff]
        %v567 = vld [vmem:[%s458 + $0x18] sm:$0xff]
        %v568 = vld [vmem:[%s458 + $0x20] sm:$0xff]
        %v569 = vld [vmem:[%s458 + $0x28] sm:$0xff]
        %v570 = vld [vmem:[%s458 + $0x30] sm:$0xff]
        %v571 = vld [vmem:[%s458 + $0x38] sm:$0xff]
        %v572 = vld [vmem:[%s458 + $0x40] sm:$0xff]
        %v573 = vld [vmem:[%s458 + $0x48] sm:$0xff]
        %v574 = vld [vmem:[%s458 + $0x50] sm:$0xff]
        %v575 = vld [vmem:[%s458 + $0x58] sm:$0xff]
        %v576 = vld [vmem:[%s458 + $0x60] sm:$0xff]
        %v577 = vld [vmem:[%s458 + $0x68] sm:$0xff]
        %v578 = vld [vmem:[%s458 + $0x70] sm:$0xff]
        %v579 = vld [vmem:[%s458 + $0x78] sm:$0xff]
        %v580 = vld [vmem:[%s458 + $0x80] sm:$0xff]
        %v581 = vld [vmem:[%s458 + $0x88] sm:$0xff]
        %v582 = vld [vmem:[%s458 + $0x90] sm:$0xff]
        %v583 = vld [vmem:[%s458 + $0x98] sm:$0xff]
        %v584 = vld [vmem:[%s458 + $0xa0] sm:$0xff]
        %v585 = vld [vmem:[%s458 + $0xa8] sm:$0xff]
        %v586 = vld [vmem:[%s458 + $0xb0] sm:$0xff]
        %v587 = vld [vmem:[%s458 + $0xb8] sm:$0xff]
        %v588 = vld [vmem:[%s458 + $0xc0] sm:$0xff]
        %v589 = vld [vmem:[%s458 + $0xc8] sm:$0xff]
        %v590 = vld [vmem:[%s458 + $0xd0] sm:$0xff]
        %v591 = vld [vmem:[%s458 + $0xd8] sm:$0xff]
        %v592 = vld [vmem:[%s458 + $0xe0] sm:$0xff]
        %v593 = vld [vmem:[%s458 + $0xe8] sm:$0xff]
        %v594 = vld [vmem:[%s458 + $0xf0] sm:$0xff]
        %v595 = vld [vmem:[%s458 + $0xf8] sm:$0xff]
        %v596 = vld [vmem:[%s458 + $0x100] sm:$0xff]
        %v597 = vld [vmem:[%s458 + $0x108] sm:$0xff]
        %v598 = vld [vmem:[%s458 + $0x110] sm:$0xff]
        %v599 = vld [vmem:[%s458 + $0x118] sm:$0xff]
        %v600 = vld [vmem:[%s458 + $0x120] sm:$0xff]
        %v601 = vld [vmem:[%s458 + $0x128] sm:$0xff]
        %v602 = vld [vmem:[%s458 + $0x130] sm:$0xff]
        %v603 = vld [vmem:[%s458 + $0x138] sm:$0xff]
        %v604 = vld [vmem:[%s458 + $0x140] sm:$0xff]
        %v605 = vld [vmem:[%s458 + $0x148] sm:$0xff]
        %v606 = vld [vmem:[%s458 + $0x150] sm:$0xff]
        %v607 = vld [vmem:[%s458 + $0x158] sm:$0xff]
        %v608 = vld [vmem:[%s458 + $0x160] sm:$0xff]
        %v609 = vld [vmem:[%s458 + $0x168] sm:$0xff]
        %v610 = vld [vmem:[%s458 + $0x170] sm:$0xff]
        %v611 = vld [vmem:[%s458 + $0x178] sm:$0xff]
        %v612 = vld [vmem:[%s458 + $0x180] sm:$0xff]
        %v613 = vld [vmem:[%s458 + $0x188] sm:$0xff]
        %v614 = vld [vmem:[%s458 + $0x190] sm:$0xff]
        %v615 = vld [vmem:[%s458 + $0x198] sm:$0xff]
        %v616 = vld [vmem:[%s458 + $0x1a0] sm:$0xff]
        %v617 = vld [vmem:[%s458 + $0x1a8] sm:$0xff]
        %v618 = vld [vmem:[%s458 + $0x1b0] sm:$0xff]
        %v619 = vld [vmem:[%s458 + $0x1b8] sm:$0xff]
        %v620 = vld [vmem:[%s458 + $0x1c0] sm:$0xff]
        %v621 = vld [vmem:[%s458 + $0x1c8] sm:$0xff]
        %v622 = vld [vmem:[%s458 + $0x1d0] sm:$0xff]
        %v623 = vld [vmem:[%s458 + $0x1d8] sm:$0xff]
        %v624 = vld [vmem:[%s458 + $0x1e0] sm:$0xff]
        %v625 = vld [vmem:[%s458 + $0x1e8] sm:$0xff]
        %v626 = vld [vmem:[%s458 + $0x1f0] sm:$0xff]
        %v627 = vld [vmem:[%s458 + $0x1f8] sm:$0xff]
        %v628 = vld [vmem:[%s519] sm:$0xf]
        %v630 = vperm.slane %v628, 0
        %v631 = vperm.slane %v628, 1
        %v632 = vperm.slane %v628, 2
        %v633 = vperm.slane %v628, 3
        %v639 = vunpack.c.l.b16 %v563
        %v640 = vunpack.c.h.b16 %v563
        %v641 = vpack.c.b16 %v639, %v639
        %v642 = vpack.c.b16 %v640, %v640
        %v709 = vunpack.c.l.b16 %v564
        %v710 = vunpack.c.h.b16 %v564
        %v711 = vunpack.c.l.b16 %v565
        %v712 = vunpack.c.h.b16 %v565
        %v713 = vunpack.c.l.b16 %v566
        %v714 = vunpack.c.h.b16 %v566
        %v715 = vunpack.c.l.b16 %v567
        %v716 = vunpack.c.h.b16 %v567
        %v717 = vunpack.c.l.b16 %v568
        %v718 = vunpack.c.h.b16 %v568
        %v719 = vunpack.c.l.b16 %v569
        %v720 = vunpack.c.h.b16 %v569
        %v721 = vunpack.c.l.b16 %v570
        %v722 = vunpack.c.h.b16 %v570
        %v723 = vunpack.c.l.b16 %v571
        %v724 = vunpack.c.h.b16 %v571
        %v725 = vunpack.c.l.b16 %v572
        %v726 = vunpack.c.h.b16 %v572
        %v727 = vunpack.c.l.b16 %v573
        %v728 = vunpack.c.h.b16 %v573
        %v729 = vunpack.c.l.b16 %v574
        %v730 = vunpack.c.h.b16 %v574
        %v731 = vunpack.c.l.b16 %v575
        %v732 = vunpack.c.h.b16 %v575
        %v733 = vunpack.c.l.b16 %v576
        %v734 = vunpack.c.h.b16 %v576
        %v735 = vunpack.c.l.b16 %v577
        %v736 = vunpack.c.h.b16 %v577
        %v737 = vunpack.c.l.b16 %v578
        %v738 = vunpack.c.h.b16 %v578
        %v739 = vunpack.c.l.b16 %v579
        %v740 = vunpack.c.h.b16 %v579
        %v741 = vunpack.c.l.b16 %v580
        %v742 = vunpack.c.h.b16 %v580
        %v743 = vunpack.c.l.b16 %v581
        %v744 = vunpack.c.h.b16 %v581
        %v745 = vunpack.c.l.b16 %v582
        %v746 = vunpack.c.h.b16 %v582
        %v747 = vunpack.c.l.b16 %v583
        %v748 = vunpack.c.h.b16 %v583
        %v749 = vunpack.c.l.b16 %v584
        %v750 = vunpack.c.h.b16 %v584
        %v751 = vunpack.c.l.b16 %v585
        %v752 = vunpack.c.h.b16 %v585
        %v753 = vunpack.c.l.b16 %v586
        %v754 = vunpack.c.h.b16 %v586
        %v755 = vunpack.c.l.b16 %v587
        %v756 = vunpack.c.h.b16 %v587
        %v757 = vunpack.c.l.b16 %v588
        %v758 = vunpack.c.h.b16 %v588
        %v759 = vunpack.c.l.b16 %v589
        %v760 = vunpack.c.h.b16 %v589
        %v761 = vunpack.c.l.b16 %v590
        %v762 = vunpack.c.h.b16 %v590
        %v763 = vunpack.c.l.b16 %v591
        %v764 = vunpack.c.h.b16 %v591
        %v765 = vunpack.c.l.b16 %v592
        %v766 = vunpack.c.h.b16 %v592
        %v767 = vunpack.c.l.b16 %v593
        %v768 = vunpack.c.h.b16 %v593
        %v769 = vunpack.c.l.b16 %v594
        %v770 = vunpack.c.h.b16 %v594
        %v771 = vunpack.c.l.b16 %v595
        %v772 = vunpack.c.h.b16 %v595
        %v773 = vunpack.c.l.b16 %v596
        %v774 = vunpack.c.h.b16 %v596
        %v775 = vunpack.c.l.b16 %v597
        %v776 = vunpack.c.h.b16 %v597
        %v777 = vunpack.c.l.b16 %v598
        %v778 = vunpack.c.h.b16 %v598
        %v779 = vunpack.c.l.b16 %v599
        %v780 = vunpack.c.h.b16 %v599
        %v781 = vunpack.c.l.b16 %v600
        %v782 = vunpack.c.h.b16 %v600
        %v783 = vunpack.c.l.b16 %v601
        %v784 = vunpack.c.h.b16 %v601
        %v785 = vunpack.c.l.b16 %v602
        %v786 = vunpack.c.h.b16 %v602
        %v787 = vunpack.c.l.b16 %v603
        %v788 = vunpack.c.h.b16 %v603
        %v789 = vunpack.c.l.b16 %v604
        %v790 = vunpack.c.h.b16 %v604
        %v791 = vunpack.c.l.b16 %v605
        %v792 = vunpack.c.h.b16 %v605
        %v793 = vunpack.c.l.b16 %v606
        %v794 = vunpack.c.h.b16 %v606
        %v795 = vunpack.c.l.b16 %v607
        %v796 = vunpack.c.h.b16 %v607
        %v797 = vunpack.c.l.b16 %v608
        %v798 = vunpack.c.h.b16 %v608
        %v799 = vunpack.c.l.b16 %v609
        %v800 = vunpack.c.h.b16 %v609
        %v801 = vunpack.c.l.b16 %v610
        %v802 = vunpack.c.h.b16 %v610
        %v803 = vunpack.c.l.b16 %v611
        %v804 = vunpack.c.h.b16 %v611
        %v805 = vunpack.c.l.b16 %v612
        %v806 = vunpack.c.h.b16 %v612
        %v807 = vunpack.c.l.b16 %v613
        %v808 = vunpack.c.h.b16 %v613
        %v809 = vunpack.c.l.b16 %v614
        %v810 = vunpack.c.h.b16 %v614
        %v811 = vunpack.c.l.b16 %v615
        %v812 = vunpack.c.h.b16 %v615
        %v813 = vunpack.c.l.b16 %v616
        %v814 = vunpack.c.h.b16 %v616
        %v815 = vunpack.c.l.b16 %v617
        %v816 = vunpack.c.h.b16 %v617
        %v817 = vunpack.c.l.b16 %v618
        %v818 = vunpack.c.h.b16 %v618
        %v819 = vunpack.c.l.b16 %v619
        %v820 = vunpack.c.h.b16 %v619
        %v821 = vunpack.c.l.b16 %v620
        %v822 = vunpack.c.h.b16 %v620
        %v823 = vunpack.c.l.b16 %v621
        %v824 = vunpack.c.h.b16 %v621
        %v825 = vunpack.c.l.b16 %v622
        %v826 = vunpack.c.h.b16 %v622
        %v827 = vunpack.c.l.b16 %v623
        %v828 = vunpack.c.h.b16 %v623
        %v829 = vunpack.c.l.b16 %v624
        %v830 = vunpack.c.h.b16 %v624
        %v831 = vunpack.c.l.b16 %v625
        %v832 = vunpack.c.h.b16 %v625
        %v833 = vunpack.c.l.b16 %v626
        %v834 = vunpack.c.h.b16 %v626
        %v835 = vunpack.c.l.b16 %v627
        %v836 = vunpack.c.h.b16 %v627
        %v837 = vpack.c.b16 %v713, %v709
        %v838 = vpack.c.b16 %v714, %v710
        %v839 = vpack.c.b16 %v715, %v711
        %v840 = vpack.c.b16 %v716, %v712
        %v841 = vpack.c.b16 %v721, %v717
        %v842 = vpack.c.b16 %v722, %v718
        %v843 = vpack.c.b16 %v723, %v719
        %v844 = vpack.c.b16 %v724, %v720
        %v845 = vpack.c.b16 %v729, %v725
        %v846 = vpack.c.b16 %v730, %v726
        %v847 = vpack.c.b16 %v731, %v727
        %v848 = vpack.c.b16 %v732, %v728
        %v849 = vpack.c.b16 %v737, %v733
        %v850 = vpack.c.b16 %v738, %v734
        %v851 = vpack.c.b16 %v739, %v735
        %v852 = vpack.c.b16 %v740, %v736
        %v853 = vpack.c.b16 %v745, %v741
        %v854 = vpack.c.b16 %v746, %v742
        %v855 = vpack.c.b16 %v747, %v743
        %v856 = vpack.c.b16 %v748, %v744
        %v857 = vpack.c.b16 %v753, %v749
        %v858 = vpack.c.b16 %v754, %v750
        %v859 = vpack.c.b16 %v755, %v751
        %v860 = vpack.c.b16 %v756, %v752
        %v861 = vpack.c.b16 %v761, %v757
        %v862 = vpack.c.b16 %v762, %v758
        %v863 = vpack.c.b16 %v763, %v759
        %v864 = vpack.c.b16 %v764, %v760
        %v865 = vpack.c.b16 %v769, %v765
        %v866 = vpack.c.b16 %v770, %v766
        %v867 = vpack.c.b16 %v771, %v767
        %v868 = vpack.c.b16 %v772, %v768
        %v869 = vpack.c.b16 %v777, %v773
        %v870 = vpack.c.b16 %v778, %v774
        %v871 = vpack.c.b16 %v779, %v775
        %v872 = vpack.c.b16 %v780, %v776
        %v873 = vpack.c.b16 %v785, %v781
        %v874 = vpack.c.b16 %v786, %v782
        %v875 = vpack.c.b16 %v787, %v783
        %v876 = vpack.c.b16 %v788, %v784
        %v877 = vpack.c.b16 %v793, %v789
        %v878 = vpack.c.b16 %v794, %v790
        %v879 = vpack.c.b16 %v795, %v791
        %v880 = vpack.c.b16 %v796, %v792
        %v881 = vpack.c.b16 %v801, %v797
        %v882 = vpack.c.b16 %v802, %v798
        %v883 = vpack.c.b16 %v803, %v799
        %v884 = vpack.c.b16 %v804, %v800
        %v885 = vpack.c.b16 %v809, %v805
        %v886 = vpack.c.b16 %v810, %v806
        %v887 = vpack.c.b16 %v811, %v807
        %v888 = vpack.c.b16 %v812, %v808
        %v889 = vpack.c.b16 %v817, %v813
        %v890 = vpack.c.b16 %v818, %v814
        %v891 = vpack.c.b16 %v819, %v815
        %v892 = vpack.c.b16 %v820, %v816
        %v893 = vpack.c.b16 %v825, %v821
        %v894 = vpack.c.b16 %v826, %v822
        %v895 = vpack.c.b16 %v827, %v823
        %v896 = vpack.c.b16 %v828, %v824
        %v897 = vpack.c.b16 %v833, %v829
        %v898 = vpack.c.b16 %v834, %v830
        %v899 = vpack.c.b16 %v835, %v831
        %v900 = vpack.c.b16 %v836, %v832
        %965 = vmatpush.bf16.msra.mxu0 %v865
        %966 = vmatpush.bf16.msra.mxu0 %v861
        %967 = vmatpush.bf16.msra.mxu0 %v857
        %968 = vmatpush.bf16.msra.mxu0 %v853
        %969 = vmatpush.bf16.msra.mxu0 %v849
        %970 = vmatpush.bf16.msra.mxu0 %v845
        %971 = vmatpush.bf16.msra.mxu0 %v841
        %972 = vmatpush.bf16.msra.mxu0 %v837
        %973 = vmatmul.bf16.gmra.mxu0 %v641
        %v974 = vpop.f32.mrf.mxu0
        %v975 = vadd.f32 %v630, %v974
        %v976 = vpop.f32.mrf.mxu0
        %977 = vdwg.mxu0
        %978 = vmatpush.bf16.msra.mxu0 %v897
        %979 = vmatpush.bf16.msra.mxu0 %v893
        %980 = vmatpush.bf16.msra.mxu0 %v889
        %981 = vmatpush.bf16.msra.mxu0 %v885
        %982 = vmatpush.bf16.msra.mxu0 %v881
        %983 = vmatpush.bf16.msra.mxu0 %v877
        %984 = vmatpush.bf16.msra.mxu0 %v873
        %985 = vmatpush.bf16.msra.mxu0 %v869
        %986 = vmatmul.bf16.gmra.mxu0 %v642
        %v987 = vpop.f32.mrf.mxu0
        %v988 = vadd.f32 %v975, %v987
        %v989 = vpop.f32.mrf.mxu0
        %990 = vdwg.mxu0
        %991 = vmatpush.bf16.msra.mxu0 %v866
        %992 = vmatpush.bf16.msra.mxu0 %v862
        %993 = vmatpush.bf16.msra.mxu0 %v858
        %994 = vmatpush.bf16.msra.mxu0 %v854
        %995 = vmatpush.bf16.msra.mxu0 %v850
        %996 = vmatpush.bf16.msra.mxu0 %v846
        %997 = vmatpush.bf16.msra.mxu0 %v842
        %998 = vmatpush.bf16.msra.mxu0 %v838
        %999 = vmatmul.bf16.gmra.mxu0 %v641
        %v1000 = vpop.f32.mrf.mxu0
        %v1001 = vadd.f32 %v631, %v1000
        %v1002 = vpop.f32.mrf.mxu0
        %1003 = vdwg.mxu0
        %1004 = vmatpush.bf16.msra.mxu0 %v898
        %1005 = vmatpush.bf16.msra.mxu0 %v894
        %1006 = vmatpush.bf16.msra.mxu0 %v890
        %1007 = vmatpush.bf16.msra.mxu0 %v886
        %1008 = vmatpush.bf16.msra.mxu0 %v882
        %1009 = vmatpush.bf16.msra.mxu0 %v878
        %1010 = vmatpush.bf16.msra.mxu0 %v874
        %1011 = vmatpush.bf16.msra.mxu0 %v870
        %1012 = vmatmul.bf16.gmra.mxu0 %v642
        %v1013 = vpop.f32.mrf.mxu0
        %v1014 = vadd.f32 %v1001, %v1013
        %v1015 = vpop.f32.mrf.mxu0
        %1016 = vdwg.mxu0
        %1017 = vmatpush.bf16.msra.mxu0 %v867
        %1018 = vmatpush.bf16.msra.mxu0 %v863
        %1019 = vmatpush.bf16.msra.mxu0 %v859
        %1020 = vmatpush.bf16.msra.mxu0 %v855
        %1021 = vmatpush.bf16.msra.mxu0 %v851
        %1022 = vmatpush.bf16.msra.mxu0 %v847
        %1023 = vmatpush.bf16.msra.mxu0 %v843
        %1024 = vmatpush.bf16.msra.mxu0 %v839
        %1025 = vmatmul.bf16.gmra.mxu0 %v641
        %v1026 = vpop.f32.mrf.mxu0
        %v1027 = vadd.f32 %v632, %v1026
        %v1028 = vpop.f32.mrf.mxu0
        %1029 = vdwg.mxu0
        %1030 = vmatpush.bf16.msra.mxu0 %v899
        %1031 = vmatpush.bf16.msra.mxu0 %v895
        %1032 = vmatpush.bf16.msra.mxu0 %v891
        %1033 = vmatpush.bf16.msra.mxu0 %v887
        %1034 = vmatpush.bf16.msra.mxu0 %v883
        %1035 = vmatpush.bf16.msra.mxu0 %v879
        %1036 = vmatpush.bf16.msra.mxu0 %v875
        %1037 = vmatpush.bf16.msra.mxu0 %v871
        %1038 = vmatmul.bf16.gmra.mxu0 %v642
        %v1039 = vpop.f32.mrf.mxu0
        %v1040 = vadd.f32 %v1027, %v1039
        %v1041 = vpop.f32.mrf.mxu0
        %1042 = vdwg.mxu0
        %1043 = vmatpush.bf16.msra.mxu0 %v868
        %1044 = vmatpush.bf16.msra.mxu0 %v864
        %1045 = vmatpush.bf16.msra.mxu0 %v860
        %1046 = vmatpush.bf16.msra.mxu0 %v856
        %1047 = vmatpush.bf16.msra.mxu0 %v852
        %1048 = vmatpush.bf16.msra.mxu0 %v848
        %1049 = vmatpush.bf16.msra.mxu0 %v844
        %1050 = vmatpush.bf16.msra.mxu0 %v840
        %1051 = vmatmul.bf16.gmra.mxu0 %v641
        %v1052 = vpop.f32.mrf.mxu0
        %v1053 = vadd.f32 %v633, %v1052
        %v1054 = vpop.f32.mrf.mxu0
        %1055 = vdwg.mxu0
        %1056 = vmatpush.bf16.msra.mxu0 %v900
        %1057 = vmatpush.bf16.msra.mxu0 %v896
        %1058 = vmatpush.bf16.msra.mxu0 %v892
        %1059 = vmatpush.bf16.msra.mxu0 %v888
        %1060 = vmatpush.bf16.msra.mxu0 %v884
        %1061 = vmatpush.bf16.msra.mxu0 %v880
        %1062 = vmatpush.bf16.msra.mxu0 %v876
        %1063 = vmatpush.bf16.msra.mxu0 %v872
        %1064 = vmatmul.bf16.gmra.mxu0 %v642
        %v1065 = vpop.f32.mrf.mxu0
        %v1066 = vadd.f32 %v1053, %v1065
        %v1067 = vpop.f32.mrf.mxu0
        %1068 = vdwg.mxu0
        %v1069 = vrot.slane %v988, 4
        %v1070 = vadd.f32 %v988, %v1069
        %v1071 = vrot.slane %v1070, 2
        %v1072 = vadd.f32 %v1070, %v1071
        %v1073 = vrot.slane %v1072, 1
        %v1074 = vadd.f32 %v1072, %v1073
        %v1075 = vrot.slane %v1014, 4
        %v1076 = vadd.f32 %v1014, %v1075
        %v1077 = vrot.slane %v1076, 2
        %v1078 = vadd.f32 %v1076, %v1077
        %v1079 = vrot.slane %v1078, 1
        %v1080 = vadd.f32 %v1078, %v1079
        %v1081 = vrot.slane %v1040, 4
        %v1082 = vadd.f32 %v1040, %v1081
        %v1083 = vrot.slane %v1082, 2
        %v1084 = vadd.f32 %v1082, %v1083
        %v1085 = vrot.slane %v1084, 1
        %v1086 = vadd.f32 %v1084, %v1085
        %v1087 = vrot.slane %v1066, 4
        %v1088 = vadd.f32 %v1066, %v1087
        %v1089 = vrot.slane %v1088, 2
        %v1090 = vadd.f32 %v1088, %v1089
        %v1091 = vrot.slane %v1090, 1
        %v1092 = vadd.f32 %v1090, %v1091
        %v1093 = vrcp.pop 8.0
        %v1094 = vmul.f32 8.0, %v1093
        %v1095 = vsub.f32 1.0, %v1094
        %v1096 = vmul.f32 %v1093, %v1095
        %v1097 = vadd.f32 %v1093, %v1096
        %vm1098 = vweird.f32 %v1093
        %v1099 = vsel %vm1098, %v1093, %v1097
        %v1100 = vmul.f32 %v1074, %v1099
        %v1101 = vmul.f32 %v1080, %v1099
        %v1102 = vmul.f32 %v1086, %v1099
        %v1103 = vmul.f32 %v1092, %v1099
        %v1104 = vmul.f32 %v988, %v988
        %v1105 = vmul.f32 %v1014, %v1014
        %v1106 = vmul.f32 %v1040, %v1040
        %v1107 = vmul.f32 %v1066, %v1066
        %v1108 = vrot.slane %v1104, 4
        %v1109 = vadd.f32 %v1104, %v1108
        %v1110 = vrot.slane %v1109, 2
        %v1111 = vadd.f32 %v1109, %v1110
        %v1112 = vrot.slane %v1111, 1
        %v1113 = vadd.f32 %v1111, %v1112
        %v1114 = vrot.slane %v1105, 4
        %v1115 = vadd.f32 %v1105, %v1114
        %v1116 = vrot.slane %v1115, 2
        %v1117 = vadd.f32 %v1115, %v1116
        %v1118 = vrot.slane %v1117, 1
        %v1119 = vadd.f32 %v1117, %v1118
        %v1120 = vrot.slane %v1106, 4
        %v1121 = vadd.f32 %v1106, %v1120
        %v1122 = vrot.slane %v1121, 2
        %v1123 = vadd.f32 %v1121, %v1122
        %v1124 = vrot.slane %v1123, 1
        %v1125 = vadd.f32 %v1123, %v1124
        %v1126 = vrot.slane %v1107, 4
        %v1127 = vadd.f32 %v1107, %v1126
        %v1128 = vrot.slane %v1127, 2
        %v1129 = vadd.f32 %v1127, %v1128
        %v1130 = vrot.slane %v1129, 1
        %v1131 = vadd.f32 %v1129, %v1130
        %v1132 = vmul.f32 %v1113, %v1099
        %v1133 = vmul.f32 %v1119, %v1099
        %v1134 = vmul.f32 %v1125, %v1099
        %v1135 = vmul.f32 %v1131, %v1099
        %v1136 = vmul.f32 %v1100, %v1100
        %v1137 = vmul.f32 %v1101, %v1101
        %v1138 = vmul.f32 %v1102, %v1102
        %v1139 = vmul.f32 %v1103, %v1103
        %v1140 = vsub.f32 %v1132, %v1136
        %v1141 = vsub.f32 %v1133, %v1137
        %v1142 = vsub.f32 %v1134, %v1138
        %v1143 = vsub.f32 %v1135, %v1139
        %v1144 = vsub.f32 %v988, %v1100
        %v1145 = vsub.f32 %v1014, %v1101
        %v1146 = vsub.f32 %v1040, %v1102
        %v1147 = vsub.f32 %v1066, %v1103
        %v1148 = vadd.f32 %v1140, 1e-05
        %v1149 = vadd.f32 %v1141, 1e-05
        %v1150 = vadd.f32 %v1142, 1e-05
        %v1151 = vadd.f32 %v1143, 1e-05
        %v1152 = vrsqrt.pop %v1148
        %v1153 = vmul.f32 %v1152, %v1148
        %v1154 = vmul.f32 %v1153, %v1152
        %v1155 = vmul.f32 0.5, %v1154
        %v1156 = vsub.f32 1.5, %v1155
        %v1157 = vmul.f32 %v1152, %v1156
        %vm1158 = vweird.f32 %v1148
        %vm1159 = vweird.f32 %v1152
        %vm1160 = vmor %vm1158, %vm1159
        %v1161 = vsel %vm1160, %v1152, %v1157
        %v1162 = vrsqrt.pop %v1149
        %v1163 = vmul.f32 %v1162, %v1149
        %v1164 = vmul.f32 %v1163, %v1162
        %v1165 = vmul.f32 0.5, %v1164
        %v1166 = vsub.f32 1.5, %v1165
        %v1167 = vmul.f32 %v1162, %v1166
        %vm1168 = vweird.f32 %v1149
        %vm1169 = vweird.f32 %v1162
        %vm1170 = vmor %vm1168, %vm1169
        %v1171 = vsel %vm1170, %v1162, %v1167
        %v1172 = vrsqrt.pop %v1150
        %v1173 = vmul.f32 %v1172, %v1150
        %v1174 = vmul.f32 %v1173, %v1172
        %v1175 = vmul.f32 0.5, %v1174
        %v1176 = vsub.f32 1.5, %v1175
        %v1177 = vmul.f32 %v1172, %v1176
        %vm1178 = vweird.f32 %v1150
        %vm1179 = vweird.f32 %v1172
        %vm1180 = vmor %vm1178, %vm1179
        %v1181 = vsel %vm1180, %v1172, %v1177
        %v1182 = vrsqrt.pop %v1151
        %v1183 = vmul.f32 %v1182, %v1151
        %v1184 = vmul.f32 %v1183, %v1182
        %v1185 = vmul.f32 0.5, %v1184
        %v1186 = vsub.f32 1.5, %v1185
        %v1187 = vmul.f32 %v1182, %v1186
        %vm1188 = vweird.f32 %v1151
        %vm1189 = vweird.f32 %v1182
        %vm1190 = vmor %vm1188, %vm1189
        %v1191 = vsel %vm1190, %v1182, %v1187
        %v1192 = vmul.f32 %v1144, %v1161
        %v1193 = vmul.f32 %v1145, %v1171
        %v1194 = vmul.f32 %v1146, %v1181
        %v1195 = vmul.f32 %v1147, %v1191
        %v1196 = vld [vmem:[%s528] sm:$0xf]
        %v1198 = vperm.slane %v1196, 0
        %v1199 = vperm.slane %v1196, 1
        %v1200 = vperm.slane %v1196, 2
        %v1201 = vperm.slane %v1196, 3
        %v1206 = vmul.f32 %v1192, %v1198
        %v1207 = vmul.f32 %v1193, %v1199
        %v1208 = vmul.f32 %v1194, %v1200
        %v1209 = vmul.f32 %v1195, %v1201
        %v1210 = vld [vmem:[%s537] sm:$0xf]
        %v1212 = vperm.slane %v1210, 0
        %v1213 = vperm.slane %v1210, 1
        %v1214 = vperm.slane %v1210, 2
        %v1215 = vperm.slane %v1210, 3
        %v1220 = vadd.f32 %v1206, %v1212
        %v1221 = vadd.f32 %v1207, %v1213
        %v1222 = vadd.f32 %v1208, %v1214
        %v1223 = vadd.f32 %v1209, %v1215
        %v1224 = vmax.f32 %v1220, 0.0
        %v1225 = vmax.f32 %v1221, 0.0
        %v1226 = vmax.f32 %v1222, 0.0
        %v1227 = vmax.f32 %v1223, 0.0
        %v1228 = vld [vmem:[#allocation2] sm:$0xff]
        %v1229 = vld [vmem:[#allocation2 + $0x8] sm:$0xff]
        %v1230 = vpack.c.bf16 %v1224, %v1224
        %v1231 = vpack.c.bf16 %v1225, %v1225
        %v1232 = vpack.c.bf16 %v1226, %v1226
        %v1233 = vpack.c.bf16 %v1227, %v1227
        %v1234 = vld [vmem:[%s548] sm:$0xff]
        %v1235 = vld [vmem:[%s548 + $0x8] sm:$0xff]
        %v1236 = vld [vmem:[%s548 + $0x10] sm:$0xff]
        %v1237 = vld [vmem:[%s548 + $0x18] sm:$0xff]
        %v1238 = vld [vmem:[%s548 + $0x20] sm:$0xff]
        %v1239 = vld [vmem:[%s548 + $0x28] sm:$0xff]
        %v1240 = vld [vmem:[%s548 + $0x30] sm:$0xff]
        %v1241 = vld [vmem:[%s548 + $0x38] sm:$0xff]
        %v1242 = vld [vmem:[%s548 + $0x40] sm:$0xff]
        %v1243 = vld [vmem:[%s548 + $0x48] sm:$0xff]
        %v1244 = vld [vmem:[%s548 + $0x50] sm:$0xff]
        %v1245 = vld [vmem:[%s548 + $0x58] sm:$0xff]
        %v1246 = vld [vmem:[%s548 + $0x60] sm:$0xff]
        %v1247 = vld [vmem:[%s548 + $0x68] sm:$0xff]
        %v1248 = vld [vmem:[%s548 + $0x70] sm:$0xff]
        %v1249 = vld [vmem:[%s548 + $0x78] sm:$0xff]
        %v1250 = vld [vmem:[%s548 + $0x80] sm:$0xff]
        %v1251 = vld [vmem:[%s548 + $0x88] sm:$0xff]
        %v1252 = vld [vmem:[%s548 + $0x90] sm:$0xff]
        %v1253 = vld [vmem:[%s548 + $0x98] sm:$0xff]
        %v1254 = vld [vmem:[%s548 + $0xa0] sm:$0xff]
        %v1255 = vld [vmem:[%s548 + $0xa8] sm:$0xff]
        %v1256 = vld [vmem:[%s548 + $0xb0] sm:$0xff]
        %v1257 = vld [vmem:[%s548 + $0xb8] sm:$0xff]
        %v1258 = vld [vmem:[%s548 + $0xc0] sm:$0xff]
        %v1259 = vld [vmem:[%s548 + $0xc8] sm:$0xff]
        %v1260 = vld [vmem:[%s548 + $0xd0] sm:$0xff]
        %v1261 = vld [vmem:[%s548 + $0xd8] sm:$0xff]
        %v1262 = vld [vmem:[%s548 + $0xe0] sm:$0xff]
        %v1263 = vld [vmem:[%s548 + $0xe8] sm:$0xff]
        %v1264 = vld [vmem:[%s548 + $0xf0] sm:$0xff]
        %v1265 = vld [vmem:[%s548 + $0xf8] sm:$0xff]
        %v1266 = vld [vmem:[%s548 + $0x100] sm:$0xff]
        %v1267 = vld [vmem:[%s548 + $0x108] sm:$0xff]
        %v1268 = vld [vmem:[%s548 + $0x110] sm:$0xff]
        %v1269 = vld [vmem:[%s548 + $0x118] sm:$0xff]
        %v1270 = vld [vmem:[%s548 + $0x120] sm:$0xff]
        %v1271 = vld [vmem:[%s548 + $0x128] sm:$0xff]
        %v1272 = vld [vmem:[%s548 + $0x130] sm:$0xff]
        %v1273 = vld [vmem:[%s548 + $0x138] sm:$0xff]
        %v1274 = vld [vmem:[%s548 + $0x140] sm:$0xff]
        %v1275 = vld [vmem:[%s548 + $0x148] sm:$0xff]
        %v1276 = vld [vmem:[%s548 + $0x150] sm:$0xff]
        %v1277 = vld [vmem:[%s548 + $0x158] sm:$0xff]
        %v1278 = vld [vmem:[%s548 + $0x160] sm:$0xff]
        %v1279 = vld [vmem:[%s548 + $0x168] sm:$0xff]
        %v1280 = vld [vmem:[%s548 + $0x170] sm:$0xff]
        %v1281 = vld [vmem:[%s548 + $0x178] sm:$0xff]
        %v1282 = vld [vmem:[%s548 + $0x180] sm:$0xff]
        %v1283 = vld [vmem:[%s548 + $0x188] sm:$0xff]
        %v1284 = vld [vmem:[%s548 + $0x190] sm:$0xff]
        %v1285 = vld [vmem:[%s548 + $0x198] sm:$0xff]
        %v1286 = vld [vmem:[%s548 + $0x1a0] sm:$0xff]
        %v1287 = vld [vmem:[%s548 + $0x1a8] sm:$0xff]
        %v1288 = vld [vmem:[%s548 + $0x1b0] sm:$0xff]
        %v1289 = vld [vmem:[%s548 + $0x1b8] sm:$0xff]
        %v1290 = vld [vmem:[%s548 + $0x1c0] sm:$0xff]
        %v1291 = vld [vmem:[%s548 + $0x1c8] sm:$0xff]
        %v1292 = vld [vmem:[%s548 + $0x1d0] sm:$0xff]
        %v1293 = vld [vmem:[%s548 + $0x1d8] sm:$0xff]
        %v1294 = vld [vmem:[%s548 + $0x1e0] sm:$0xff]
        %v1295 = vld [vmem:[%s548 + $0x1e8] sm:$0xff]
        %v1296 = vld [vmem:[%s548 + $0x1f0] sm:$0xff]
        %v1297 = vld [vmem:[%s548 + $0x1f8] sm:$0xff]
        %v1362 = vunpack.c.l.b16 %v1234
        %v1363 = vunpack.c.h.b16 %v1234
        %v1364 = vunpack.c.l.b16 %v1235
        %v1365 = vunpack.c.h.b16 %v1235
        %v1366 = vunpack.c.l.b16 %v1236
        %v1367 = vunpack.c.h.b16 %v1236
        %v1368 = vunpack.c.l.b16 %v1237
        %v1369 = vunpack.c.h.b16 %v1237
        %v1370 = vunpack.c.l.b16 %v1238
        %v1371 = vunpack.c.h.b16 %v1238
        %v1372 = vunpack.c.l.b16 %v1239
        %v1373 = vunpack.c.h.b16 %v1239
        %v1374 = vunpack.c.l.b16 %v1240
        %v1375 = vunpack.c.h.b16 %v1240
        %v1376 = vunpack.c.l.b16 %v1241
        %v1377 = vunpack.c.h.b16 %v1241
        %v1378 = vunpack.c.l.b16 %v1242
        %v1379 = vunpack.c.h.b16 %v1242
        %v1380 = vunpack.c.l.b16 %v1243
        %v1381 = vunpack.c.h.b16 %v1243
        %v1382 = vunpack.c.l.b16 %v1244
        %v1383 = vunpack.c.h.b16 %v1244
        %v1384 = vunpack.c.l.b16 %v1245
        %v1385 = vunpack.c.h.b16 %v1245
        %v1386 = vunpack.c.l.b16 %v1246
        %v1387 = vunpack.c.h.b16 %v1246
        %v1388 = vunpack.c.l.b16 %v1247
        %v1389 = vunpack.c.h.b16 %v1247
        %v1390 = vunpack.c.l.b16 %v1248
        %v1391 = vunpack.c.h.b16 %v1248
        %v1392 = vunpack.c.l.b16 %v1249
        %v1393 = vunpack.c.h.b16 %v1249
        %v1394 = vunpack.c.l.b16 %v1250
        %v1395 = vunpack.c.h.b16 %v1250
        %v1396 = vunpack.c.l.b16 %v1251
        %v1397 = vunpack.c.h.b16 %v1251
        %v1398 = vunpack.c.l.b16 %v1252
        %v1399 = vunpack.c.h.b16 %v1252
        %v1400 = vunpack.c.l.b16 %v1253
        %v1401 = vunpack.c.h.b16 %v1253
        %v1402 = vunpack.c.l.b16 %v1254
        %v1403 = vunpack.c.h.b16 %v1254
        %v1404 = vunpack.c.l.b16 %v1255
        %v1405 = vunpack.c.h.b16 %v1255
        %v1406 = vunpack.c.l.b16 %v1256
        %v1407 = vunpack.c.h.b16 %v1256
        %v1408 = vunpack.c.l.b16 %v1257
        %v1409 = vunpack.c.h.b16 %v1257
        %v1410 = vunpack.c.l.b16 %v1258
        %v1411 = vunpack.c.h.b16 %v1258
        %v1412 = vunpack.c.l.b16 %v1259
        %v1413 = vunpack.c.h.b16 %v1259
        %v1414 = vunpack.c.l.b16 %v1260
        %v1415 = vunpack.c.h.b16 %v1260
        %v1416 = vunpack.c.l.b16 %v1261
        %v1417 = vunpack.c.h.b16 %v1261
        %v1418 = vunpack.c.l.b16 %v1262
        %v1419 = vunpack.c.h.b16 %v1262
        %v1420 = vunpack.c.l.b16 %v1263
        %v1421 = vunpack.c.h.b16 %v1263
        %v1422 = vunpack.c.l.b16 %v1264
        %v1423 = vunpack.c.h.b16 %v1264
        %v1424 = vunpack.c.l.b16 %v1265
        %v1425 = vunpack.c.h.b16 %v1265
        %v1426 = vunpack.c.l.b16 %v1266
        %v1427 = vunpack.c.h.b16 %v1266
        %v1428 = vunpack.c.l.b16 %v1267
        %v1429 = vunpack.c.h.b16 %v1267
        %v1430 = vunpack.c.l.b16 %v1268
        %v1431 = vunpack.c.h.b16 %v1268
        %v1432 = vunpack.c.l.b16 %v1269
        %v1433 = vunpack.c.h.b16 %v1269
        %v1434 = vunpack.c.l.b16 %v1270
        %v1435 = vunpack.c.h.b16 %v1270
        %v1436 = vunpack.c.l.b16 %v1271
        %v1437 = vunpack.c.h.b16 %v1271
        %v1438 = vunpack.c.l.b16 %v1272
        %v1439 = vunpack.c.h.b16 %v1272
        %v1440 = vunpack.c.l.b16 %v1273
        %v1441 = vunpack.c.h.b16 %v1273
        %v1442 = vunpack.c.l.b16 %v1274
        %v1443 = vunpack.c.h.b16 %v1274
        %v1444 = vunpack.c.l.b16 %v1275
        %v1445 = vunpack.c.h.b16 %v1275
        %v1446 = vunpack.c.l.b16 %v1276
        %v1447 = vunpack.c.h.b16 %v1276
        %v1448 = vunpack.c.l.b16 %v1277
        %v1449 = vunpack.c.h.b16 %v1277
        %v1450 = vunpack.c.l.b16 %v1278
        %v1451 = vunpack.c.h.b16 %v1278
        %v1452 = vunpack.c.l.b16 %v1279
        %v1453 = vunpack.c.h.b16 %v1279
        %v1454 = vunpack.c.l.b16 %v1280
        %v1455 = vunpack.c.h.b16 %v1280
        %v1456 = vunpack.c.l.b16 %v1281
        %v1457 = vunpack.c.h.b16 %v1281
        %v1458 = vunpack.c.l.b16 %v1282
        %v1459 = vunpack.c.h.b16 %v1282
        %v1460 = vunpack.c.l.b16 %v1283
        %v1461 = vunpack.c.h.b16 %v1283
        %v1462 = vunpack.c.l.b16 %v1284
        %v1463 = vunpack.c.h.b16 %v1284
        %v1464 = vunpack.c.l.b16 %v1285
        %v1465 = vunpack.c.h.b16 %v1285
        %v1466 = vunpack.c.l.b16 %v1286
        %v1467 = vunpack.c.h.b16 %v1286
        %v1468 = vunpack.c.l.b16 %v1287
        %v1469 = vunpack.c.h.b16 %v1287
        %v1470 = vunpack.c.l.b16 %v1288
        %v1471 = vunpack.c.h.b16 %v1288
        %v1472 = vunpack.c.l.b16 %v1289
        %v1473 = vunpack.c.h.b16 %v1289
        %v1474 = vunpack.c.l.b16 %v1290
        %v1475 = vunpack.c.h.b16 %v1290
        %v1476 = vunpack.c.l.b16 %v1291
        %v1477 = vunpack.c.h.b16 %v1291
        %v1478 = vunpack.c.l.b16 %v1292
        %v1479 = vunpack.c.h.b16 %v1292
        %v1480 = vunpack.c.l.b16 %v1293
        %v1481 = vunpack.c.h.b16 %v1293
        %v1482 = vunpack.c.l.b16 %v1294
        %v1483 = vunpack.c.h.b16 %v1294
        %v1484 = vunpack.c.l.b16 %v1295
        %v1485 = vunpack.c.h.b16 %v1295
        %v1486 = vunpack.c.l.b16 %v1296
        %v1487 = vunpack.c.h.b16 %v1296
        %v1488 = vunpack.c.l.b16 %v1297
        %v1489 = vunpack.c.h.b16 %v1297
        %v1490 = vpack.c.b16 %v1364, %v1362
        %v1491 = vpack.c.b16 %v1365, %v1363
        %v1492 = vpack.c.b16 %v1368, %v1366
        %v1493 = vpack.c.b16 %v1369, %v1367
        %v1494 = vpack.c.b16 %v1372, %v1370
        %v1495 = vpack.c.b16 %v1373, %v1371
        %v1496 = vpack.c.b16 %v1376, %v1374
        %v1497 = vpack.c.b16 %v1377, %v1375
        %v1498 = vpack.c.b16 %v1380, %v1378
        %v1499 = vpack.c.b16 %v1381, %v1379
        %v1500 = vpack.c.b16 %v1384, %v1382
        %v1501 = vpack.c.b16 %v1385, %v1383
        %v1502 = vpack.c.b16 %v1388, %v1386
        %v1503 = vpack.c.b16 %v1389, %v1387
        %v1504 = vpack.c.b16 %v1392, %v1390
        %v1505 = vpack.c.b16 %v1393, %v1391
        %v1506 = vpack.c.b16 %v1396, %v1394
        %v1507 = vpack.c.b16 %v1397, %v1395
        %v1508 = vpack.c.b16 %v1400, %v1398
        %v1509 = vpack.c.b16 %v1401, %v1399
        %v1510 = vpack.c.b16 %v1404, %v1402
        %v1511 = vpack.c.b16 %v1405, %v1403
        %v1512 = vpack.c.b16 %v1408, %v1406
        %v1513 = vpack.c.b16 %v1409, %v1407
        %v1514 = vpack.c.b16 %v1412, %v1410
        %v1515 = vpack.c.b16 %v1413, %v1411
        %v1516 = vpack.c.b16 %v1416, %v1414
        %v1517 = vpack.c.b16 %v1417, %v1415
        %v1518 = vpack.c.b16 %v1420, %v1418
        %v1519 = vpack.c.b16 %v1421, %v1419
        %v1520 = vpack.c.b16 %v1424, %v1422
        %v1521 = vpack.c.b16 %v1425, %v1423
        %v1522 = vpack.c.b16 %v1428, %v1426
        %v1523 = vpack.c.b16 %v1429, %v1427
        %v1524 = vpack.c.b16 %v1432, %v1430
        %v1525 = vpack.c.b16 %v1433, %v1431
        %v1526 = vpack.c.b16 %v1436, %v1434
        %v1527 = vpack.c.b16 %v1437, %v1435
        %v1528 = vpack.c.b16 %v1440, %v1438
        %v1529 = vpack.c.b16 %v1441, %v1439
        %v1530 = vpack.c.b16 %v1444, %v1442
        %v1531 = vpack.c.b16 %v1445, %v1443
        %v1532 = vpack.c.b16 %v1448, %v1446
        %v1533 = vpack.c.b16 %v1449, %v1447
        %v1534 = vpack.c.b16 %v1452, %v1450
        %v1535 = vpack.c.b16 %v1453, %v1451
        %v1536 = vpack.c.b16 %v1456, %v1454
        %v1537 = vpack.c.b16 %v1457, %v1455
        %v1538 = vpack.c.b16 %v1460, %v1458
        %v1539 = vpack.c.b16 %v1461, %v1459
        %v1540 = vpack.c.b16 %v1464, %v1462
        %v1541 = vpack.c.b16 %v1465, %v1463
        %v1542 = vpack.c.b16 %v1468, %v1466
        %v1543 = vpack.c.b16 %v1469, %v1467
        %v1544 = vpack.c.b16 %v1472, %v1470
        %v1545 = vpack.c.b16 %v1473, %v1471
        %v1546 = vpack.c.b16 %v1476, %v1474
        %v1547 = vpack.c.b16 %v1477, %v1475
        %v1548 = vpack.c.b16 %v1480, %v1478
        %v1549 = vpack.c.b16 %v1481, %v1479
        %v1550 = vpack.c.b16 %v1484, %v1482
        %v1551 = vpack.c.b16 %v1485, %v1483
        %v1552 = vpack.c.b16 %v1488, %v1486
        %v1553 = vpack.c.b16 %v1489, %v1487
        %1618 = vmatpush.bf16.msra.mxu0 %v1504
        %1619 = vmatpush.bf16.msra.mxu0 %v1502
        %1620 = vmatpush.bf16.msra.mxu0 %v1500
        %1621 = vmatpush.bf16.msra.mxu0 %v1498
        %1622 = vmatpush.bf16.msra.mxu0 %v1496
        %1623 = vmatpush.bf16.msra.mxu0 %v1494
        %1624 = vmatpush.bf16.msra.mxu0 %v1492
        %1625 = vmatpush.bf16.msra.mxu0 %v1490
        %1626 = vmatmul.bf16.gmra.mxu0 %v1230
        %v1627 = vpop.f32.mrf.mxu0
        %v1628 = vadd.f32 0.0, %v1627
        %v1629 = vpop.f32.mrf.mxu0
        %1630 = vdwg.mxu0
        %1631 = vmatpush.bf16.msra.mxu0 %v1520
        %1632 = vmatpush.bf16.msra.mxu0 %v1518
        %1633 = vmatpush.bf16.msra.mxu0 %v1516
        %1634 = vmatpush.bf16.msra.mxu0 %v1514
        %1635 = vmatpush.bf16.msra.mxu0 %v1512
        %1636 = vmatpush.bf16.msra.mxu0 %v1510
        %1637 = vmatpush.bf16.msra.mxu0 %v1508
        %1638 = vmatpush.bf16.msra.mxu0 %v1506
        %1639 = vmatmul.bf16.gmra.mxu0 %v1231
        %v1640 = vpop.f32.mrf.mxu0
        %v1641 = vadd.f32 %v1628, %v1640
        %v1642 = vpop.f32.mrf.mxu0
        %1643 = vdwg.mxu0
        %1644 = vmatpush.bf16.msra.mxu0 %v1536
        %1645 = vmatpush.bf16.msra.mxu0 %v1534
        %1646 = vmatpush.bf16.msra.mxu0 %v1532
        %1647 = vmatpush.bf16.msra.mxu0 %v1530
        %1648 = vmatpush.bf16.msra.mxu0 %v1528
        %1649 = vmatpush.bf16.msra.mxu0 %v1526
        %1650 = vmatpush.bf16.msra.mxu0 %v1524
        %1651 = vmatpush.bf16.msra.mxu0 %v1522
        %1652 = vmatmul.bf16.gmra.mxu0 %v1232
        %v1653 = vpop.f32.mrf.mxu0
        %v1654 = vadd.f32 %v1641, %v1653
        %v1655 = vpop.f32.mrf.mxu0
        %1656 = vdwg.mxu0
        %1657 = vmatpush.bf16.msra.mxu0 %v1552
        %1658 = vmatpush.bf16.msra.mxu0 %v1550
        %1659 = vmatpush.bf16.msra.mxu0 %v1548
        %1660 = vmatpush.bf16.msra.mxu0 %v1546
        %1661 = vmatpush.bf16.msra.mxu0 %v1544
        %1662 = vmatpush.bf16.msra.mxu0 %v1542
        %1663 = vmatpush.bf16.msra.mxu0 %v1540
        %1664 = vmatpush.bf16.msra.mxu0 %v1538
        %1665 = vmatmul.bf16.gmra.mxu0 %v1233
        %v1666 = vpop.f32.mrf.mxu0
        %v1667 = vadd.f32 %v1654, %v1666
        %v1668 = vpop.f32.mrf.mxu0
        %1669 = vdwg.mxu0
        %1670 = vmatpush.bf16.msra.mxu0 %v1505
        %1671 = vmatpush.bf16.msra.mxu0 %v1503
        %1672 = vmatpush.bf16.msra.mxu0 %v1501
        %1673 = vmatpush.bf16.msra.mxu0 %v1499
        %1674 = vmatpush.bf16.msra.mxu0 %v1497
        %1675 = vmatpush.bf16.msra.mxu0 %v1495
        %1676 = vmatpush.bf16.msra.mxu0 %v1493
        %1677 = vmatpush.bf16.msra.mxu0 %v1491
        %1678 = vmatmul.bf16.gmra.mxu0 %v1230
        %v1679 = vpop.f32.mrf.mxu0
        %v1680 = vadd.f32 0.0, %v1679
        %v1681 = vpop.f32.mrf.mxu0
        %1682 = vdwg.mxu0
        %1683 = vmatpush.bf16.msra.mxu0 %v1521
        %1684 = vmatpush.bf16.msra.mxu0 %v1519
        %1685 = vmatpush.bf16.msra.mxu0 %v1517
        %1686 = vmatpush.bf16.msra.mxu0 %v1515
        %1687 = vmatpush.bf16.msra.mxu0 %v1513
        %1688 = vmatpush.bf16.msra.mxu0 %v1511
        %1689 = vmatpush.bf16.msra.mxu0 %v1509
        %1690 = vmatpush.bf16.msra.mxu0 %v1507
        %1691 = vmatmul.bf16.gmra.mxu0 %v1231
        %v1692 = vpop.f32.mrf.mxu0
        %v1693 = vadd.f32 %v1680, %v1692
        %v1694 = vpop.f32.mrf.mxu0
        %1695 = vdwg.mxu0
        %1696 = vmatpush.bf16.msra.mxu0 %v1537
        %1697 = vmatpush.bf16.msra.mxu0 %v1535
        %1698 = vmatpush.bf16.msra.mxu0 %v1533
        %1699 = vmatpush.bf16.msra.mxu0 %v1531
        %1700 = vmatpush.bf16.msra.mxu0 %v1529
        %1701 = vmatpush.bf16.msra.mxu0 %v1527
        %1702 = vmatpush.bf16.msra.mxu0 %v1525
        %1703 = vmatpush.bf16.msra.mxu0 %v1523
        %1704 = vmatmul.bf16.gmra.mxu0 %v1232
        %v1705 = vpop.f32.mrf.mxu0
        %v1706 = vadd.f32 %v1693, %v1705
        %v1707 = vpop.f32.mrf.mxu0
        %1708 = vdwg.mxu0
        %1709 = vmatpush.bf16.msra.mxu0 %v1553
        %1710 = vmatpush.bf16.msra.mxu0 %v1551
        %1711 = vmatpush.bf16.msra.mxu0 %v1549
        %1712 = vmatpush.bf16.msra.mxu0 %v1547
        %1713 = vmatpush.bf16.msra.mxu0 %v1545
        %1714 = vmatpush.bf16.msra.mxu0 %v1543
        %1715 = vmatpush.bf16.msra.mxu0 %v1541
        %1716 = vmatpush.bf16.msra.mxu0 %v1539
        %1717 = vmatmul.bf16.gmra.mxu0 %v1233
        %v1718 = vpop.f32.mrf.mxu0
        %v1719 = vadd.f32 %v1706, %v1718
        %v1720 = vpop.f32.mrf.mxu0
        %1721 = vdwg.mxu0
        %v1722 = vadd.f32 %v1228, %v1667
        %v1723 = vadd.f32 %v1229, %v1719
        %1724 = vst [vmem:[#allocation2] sm:$0xff] %v1722
        %1725 = vst [vmem:[#allocation2 + $0x8] sm:$0xff] %v1723
        %p1726 = scmp.eq.s32.totalorder %s22, 3
        // Predicated region
        $region72: #{pred_mlp.1} parent=62 // pred_check
          %p1727 = pneg %p1726
        $region73: #{pred_mlp.1} parent=62 // pred_check_branch
          %1729 = sbr.rel (%p1727) target = $region75
        $region74: #{pred_mlp.1} parent=62 // pred_region
          %v1730 = vld [vmem:[#allocation2] sm:$0xff]
          %v1731 = vld [vmem:[#allocation2 + $0x8] sm:$0xff]
          %1732 = vst [vmem:[%s556] sm:$0xff] %v1730
          %1733 = vst [vmem:[%s556 + $0x8] sm:$0xff] %v1731
        $region75: #{pred_mlp.1} parent=62 // pred_fallthru
          _
        %p1734 = scmp.lt.s32.totalorder %s21, 1
        %s1735 = scalar_select %p1734, %s21, 1
        %s1736 = smul.addr %s1735, 2
        %s1737 = smul.addr %s1736, 8
        %s1738 = scalar_lea.vmem %s6, %s1737
        // Predicated region
        $region76: #{pred_mlp.1} parent=62 // pred_check
          %p1739 = pneg %p218
        $region77: #{pred_mlp.1} parent=62 // pred_check_branch
          %1741 = sbr.rel (%p1739) target = $region79
        $region78: #{pred_mlp.1} parent=62 // pred_region
          _
        $region79: #{pred_mlp.1} parent=62 // pred_fallthru
          _
      $region63: #{pred_mlp.1} parent=5 // pred_fallthru
        _
      %p1742 = scmp.le.s32.totalorder 2, %s12
      // Predicated region
      $region80: #{pred_mlp.1} parent=5 // pred_check
        %p1743 = pneg %p1742
      $region81: #{pred_mlp.1} parent=5 // pred_check_branch
        %1745 = sbr.rel (%p1743) target = $region83
      $region82: #{pred_mlp.1} parent=5 // pred_region
        %s1746 = ssub.s32 %s12, 2
        // Predicated region
        $region84: #{pred_mlp.1} parent=82 // pred_check
          %p1747 = pneg %p224
        $region85: #{pred_mlp.1} parent=82 // pred_check_branch
          %1749 = sbr.rel (%p1747) target = $region87
        $region86: #{pred_mlp.1} parent=82 // pred_region
          %p1750 = scmp.lt.s32.totalorder %s23, 1
          %s1751 = scalar_select %p1750, %s23, 1
          %s1752 = smul.addr %s1751, 2
          %s1753 = smul.addr %s1752, 8
          %s1754 = scalar_lea.vmem %s6, %s1753
        $region87: #{pred_mlp.1} parent=82 // pred_fallthru
          _
      $region83: #{pred_mlp.1} parent=5 // pred_fallthru
        _
    $region6: #{pred_mlp.1} parent=1 // loop_footer
      %s16 = sadd.s32 1, %s12
    $region7: #{pred_mlp.1} parent=1 // loop_footer_branch
      %11 = sbr.rel target = $region3
    $region8: #{pred_mlp.1} parent=1 // loop_exit
      _

</llo_original>
